<compile_context>
chip_gen: v6e
topology: v6e:2x2x1
jax: 0.10.0
libtpu: 0.0.40
codegen_flags: <defaults>
</compile_context>

<pallas_src>
import functools

import jax
import jax.numpy as jnp
from jax.experimental import pallas as pl
from jax.experimental.pallas import tpu as pltpu


def _round_up(x, m):
    return (x + m - 1) // m * m


def _vmem_capacity_bytes():
    """Per-TensorCore VMEM capacity; conservative fallback if query fails."""
    try:
        info = pltpu.get_tpu_info()
        cap = getattr(info, "vmem_capacity_bytes", None)
        if cap:
            return int(cap)
    except Exception:
        pass
    return 64 * 1024 * 1024  # v7x worst case


# ----------------------------------------------------------------------------
# Pallas kernel: vocab-tiled logits + online logsumexp + target gather
#                -> per-row masked NLL
# ----------------------------------------------------------------------------
def lm_criterion_pallas(hidden, w_out, targets, mask, *, tm=512, tv_cap=2048):
    """LanguageModelCriterion.

    hidden  : (R, H)  per-step decoder hidden states
    w_out   : (H, V)  output projection (f32 or bf16)
    targets : (R,)    int token ids   (labels[:, 1:] flattened)
    mask    : (R,)    float mask      (masks[:, 1:] flattened)

    Returns sum_r(-log_softmax(hidden @ w_out)[r, targets[r]] * mask[r]) / sum(mask).

    NOTE: matches the PyTorch criterion exactly, including the unguarded
    division by sum(mask) — callers must pass at least one nonzero mask entry.
    """
    R, H = hidden.shape
    V = w_out.shape[1]

    vmem_cap = _vmem_capacity_bytes()

    # --- tiling ---------------------------------------------------------------
    # Row tile: big enough to keep the streamed W_out tile compute-bound
    # (arithmetic intensity on W is exactly tm flops/byte), multiple of 128.
    tm = min(tm, _round_up(max(R, 1), 128))
    if R >= 2 * 128:
        # Keep >= 2 row tiles so the "parallel" row axis can be split across
        # the two TensorCores on v7x (megacore).
        tm = min(tm, _round_up((R + 1) // 2, 128))
    r_pad = _round_up(R, tm)

    # Vocab tile: lane-dense multiple of 128; cap so the double-buffered bf16
    # W tile + f32 logits fit comfortably (v7x has only 64 MiB VMEM per TC).
    if vmem_cap < (100 << 20):
        tv_cap = min(tv_cap, 1024)
    tv = min(_round_up(V, 128), tv_cap)
    v_pad = _round_up(V, tv)

    n_row_tiles = r_pad // tm
    n_voc_tiles = v_pad // tv
    need_vmask = v_pad != V
    n_pad_cols = float(v_pad - V)  # python float -> inline literal, not a captured const

    # --- cast + pad -------------------------------------------------------------
    h_p = hidden.astype(jnp.bfloat16)
    if r_pad != R:
        h_p = jnp.pad(h_p, ((0, r_pad - R), (0, 0)))
        targets = jnp.pad(targets, (0, r_pad - R))   # pad target id 0 (< V)
        mask = jnp.pad(mask, (0, r_pad - R))          # pad mask 0 -> no effect
    # Cast W_out before padding (skip if caller already keeps it in bf16).
    w_p = w_out if w_out.dtype == jnp.bfloat16 else w_out.astype(jnp.bfloat16)
    if need_vmask:
        # Zero columns -> padded logits are exactly 0; corrected in-kernel on
        # the last vocab tile only.
        w_p = jnp.pad(w_p, ((0, 0), (0, v_pad - V)))

    t_p = targets.reshape(r_pad, 1).astype(jnp.int32)
    m_p = mask.reshape(r_pad, 1).astype(jnp.float32)

    def kernel(h_ref, w_ref, tgt_ref, msk_ref, nll_ref, m_sc, l_sc, t_sc):
        j = pl.program_id(1)      # vocab tile ("arbitrary", reduction)

        @pl.when(j == 0)
        def _():
            m_sc[...] = jnp.full_like(m_sc, -jnp.inf)
            l_sc[...] = jnp.zeros_like(l_sc)
            t_sc[...] = jnp.zeros_like(t_sc)

        # (tm, H) bf16 @ (H, tv) bf16 -> (tm, tv) f32 on the MXU.
        logits = jnp.dot(h_ref[...], w_ref[...],
                         preferred_element_type=jnp.float32)

        # Online logsumexp over vocab tiles (flash-style running max / sum).
        # Padded vocab columns (zero W cols -> logits exactly 0) are allowed to
        # participate here; their contribution is removed in the epilogue.
        m_prev = m_sc[...]
        m_new = jnp.maximum(m_prev, jnp.max(logits, axis=-1, keepdims=True))
        alpha = jnp.exp(m_prev - m_new)
        l_sc[...] = alpha * l_sc[...] + jnp.sum(jnp.exp(logits - m_new),
                                                axis=-1, keepdims=True)
        m_sc[...] = m_new

        # Target-logit gather: local lane index vs. tile-shifted target id
        # (no per-step full-tile `iota + j*tv` add).  Each target hits exactly
        # one vocab tile; padded lanes can never match (target ids < V).
        lane_local = jax.lax.broadcasted_iota(jnp.int32, logits.shape, 1)
        tgt_local = tgt_ref[...] - j * tv                    # (tm, 1) int32
        t_sc[...] = t_sc[...] + jnp.sum(
            jnp.where(lane_local == tgt_local, logits, 0.0),
            axis=-1, keepdims=True)

        @pl.when(j == n_voc_tiles - 1)
        def _():
            l = l_sc[...]
            if need_vmask:
                # Remove the padded columns' exp(0 - m) contribution; only the
                # last vocab tile contains padding, so this is a (tm, 1) fixup
                # instead of a per-logit compare+select on every step.
                l = l - n_pad_cols * jnp.exp(-m_sc[...])
            lse = m_sc[...] + jnp.log(l)
            nll_ref[...] = (lse - t_sc[...]) * msk_ref[...]  # masked -log p(target)

    # VMEM budget (bf16 tiles double-buffered, lane-padded small arrays) + headroom.
    vmem_bytes = (
        2 * tm * H * 2              # hidden tile (bf16, double-buffered)
        + 2 * H * tv * 2            # W_out vocab tile (bf16, double-buffered)
        + 2 * 2 * tm * 128 * 4      # targets + mask row-tile blocks (lane-padded)
        + 2 * tm * 128 * 4          # per-row NLL output block
        + 3 * tm * 128 * 4          # m/l/t scratch (lane-padded)
        + 4 * tm * tv * 4           # f32 logits + elementwise temporaries
    )
    vmem_limit = int(min(vmem_bytes + (4 << 20), int(vmem_cap * 0.85)))

    cost = pl.CostEstimate(
        flops=2 * r_pad * H * v_pad,
        transcendentals=r_pad * v_pad + 2 * r_pad,
        bytes_accessed=(r_pad * H * 2
                        + n_row_tiles * H * v_pad * 2
                        + r_pad * 8 + r_pad * 4),
    )

    nll = pl.pallas_call(
        kernel,
        out_shape=jax.ShapeDtypeStruct((r_pad, 1), jnp.float32),
        grid_spec=pltpu.PrefetchScalarGridSpec(
            num_scalar_prefetch=0,
            grid=(n_row_tiles, n_voc_tiles),
            in_specs=[
                pl.BlockSpec((tm, H), lambda i, j: (i, 0)),   # hidden rows (resident across j)
                pl.BlockSpec((H, tv), lambda i, j: (0, j)),   # W_out vocab tile (streamed)
                pl.BlockSpec((tm, 1), lambda i, j: (i, 0)),   # targets (one DMA per row tile)
                pl.BlockSpec((tm, 1), lambda i, j: (i, 0)),   # mask    (one DMA per row tile)
            ],
            out_specs=pl.BlockSpec((tm, 1), lambda i, j: (i, 0)),
            scratch_shapes=[
                pltpu.VMEM((tm, 1), jnp.float32),   # running max
                pltpu.VMEM((tm, 1), jnp.float32),   # running sum(exp)
                pltpu.VMEM((tm, 1), jnp.float32),   # target logit accumulator
            ],
        ),
        compiler_params=pltpu.CompilerParams(
            dimension_semantics=("parallel", "arbitrary"),
            vmem_limit_bytes=vmem_limit,
        ),
        cost_estimate=cost,
    )(h_p, w_p, t_p, m_p)

    # Final scalar reduction (a few hundred f32 adds) left to XLA; on v7x this
    # also merges the partials produced by the two TensorCores.  Division is
    # unguarded to match the PyTorch criterion (requires sum(mask) > 0).
    return jnp.sum(nll) / jnp.sum(m_p)


# ----------------------------------------------------------------------------
# Synthetic captioning "model" glue (deterministic params, plain JAX)
# ----------------------------------------------------------------------------
def init_params(key, *, d_fc, d_att, d_word, d_attr, d_seg, d_box, hidden, vocab):
    ks = jax.random.split(key, 8)
    s = 0.05
    return {
        "W_fc":   s * jax.random.normal(ks[0], (d_fc, hidden), jnp.float32),
        "W_att":  s * jax.random.normal(ks[1], (d_att, hidden), jnp.float32),
        "W_word": s * jax.random.normal(ks[2], (d_word, hidden), jnp.float32),
        "W_attr": s * jax.random.normal(ks[3], (d_attr, hidden), jnp.float32),
        "W_seg":  s * jax.random.normal(ks[4], (d_seg, hidden), jnp.float32),
        "W_box":  s * jax.random.normal(ks[5], (d_box, hidden), jnp.float32),
        "E":      s * jax.random.normal(ks[6], (vocab, hidden), jnp.float32),
        "W_out":  s * jax.random.normal(ks[7], (hidden, vocab), jnp.float32),
    }


def synthetic_model_hidden(params, fc_feats, att_feats, word_feats, attr_feats,
                           seg_feats, boxes_feats, tokens, att_masks):
    """Fuse features + embed input tokens -> per-step hidden states (B, T, H)."""
    am = att_masks[..., None].astype(jnp.float32)
    att_mean = (att_feats * am).sum(axis=1) / jnp.maximum(am.sum(axis=1), 1.0)
    ctx = jnp.tanh(
        fc_feats @ params["W_fc"]
        + att_mean @ params["W_att"]
        + word_feats.mean(axis=1) @ params["W_word"]
        + attr_feats.mean(axis=1) @ params["W_attr"]
        + seg_feats.mean(axis=1) @ params["W_seg"]
        + boxes_feats.mean(axis=1) @ params["W_box"]
    )                                                 # (B, H)
    emb = params["E"][tokens]                         # (B, T, H)
    return jnp.tanh(emb + ctx[:, None, :])            # (B, T, H)


@functools.partial(jax.jit, static_argnames=("sc_flag", "tm", "tv_cap"))
def loss_wrapper_forward(params, fc_feats, att_feats, word_feats, attr_feats,
                         seg_feats, boxes_feats, labels, masks, att_masks,
                         sc_flag=False, tm=512, tv_cap=2048):
    out = {}
    if sc_flag:
        # TODO(synk): self-critical branch (sampling + CIDEr reward) not translatable.
        raise NotImplementedError("sc_flag=True path not implemented")
    tokens = labels[:, :-1]                           # (B, T) decoder inputs
    h = synthetic_model_hidden(params, fc_feats, att_feats, word_feats,
                               attr_feats, seg_feats, boxes_feats, tokens, att_masks)
    B, T, H = h.shape
    loss = lm_criterion_pallas(
        h.reshape(B * T, H), params["W_out"],
        labels[:, 1:].reshape(-1), masks[:, 1:].reshape(-1),
        tm=tm, tv_cap=tv_cap)
    out["loss"] = loss
    return out


# ----------------------------------------------------------------------------
# Reference (pure JAX) for validation
# ----------------------------------------------------------------------------
def reference_loss(params, fc, att, word, attr, seg, boxes, labels, masks,
                   att_masks, compute_dtype=jnp.float32):
    h = synthetic_model_hidden(params, fc, att, word, attr, seg, boxes,
                               labels[:, :-1], att_masks)
    logits = jnp.dot(h.astype(compute_dtype), params["W_out"].astype(compute_dtype),
                     preferred_element_type=jnp.float32)
    logp = jax.nn.log_softmax(logits, axis=-1)
    tgt = labels[:, 1:]
    msk = masks[:, 1:].astype(jnp.float32)
    picked = jnp.take_along_axis(logp, tgt[..., None], axis=-1)[..., 0]
    return -(picked * msk).sum() / msk.sum()


if __name__ == "__main__":
    B, T = 2, 8          # labels have length T+1 = 9
    V, HID = 500, 128    # vocab deliberately not a multiple of 128 (exercises padding)
    D_FC, D_ATT, D_WORD, D_ATTR, D_SEG, D_BOX = 20, 24, 16, 16, 16, 4
    N_ATT, N_W = 6, 5

    key = jax.random.PRNGKey(0)
    kp, k1, k2, k3, k4, k5, k6, k7, k8, k9 = jax.random.split(key, 10)

    params = init_params(kp, d_fc=D_FC, d_att=D_ATT, d_word=D_WORD, d_attr=D_ATTR,
                         d_seg=D_SEG, d_box=D_BOX, hidden=HID, vocab=V)

    fc_feats = jax.random.normal(k1, (B, D_FC), jnp.float32)
    att_feats = jax.random.normal(k2, (B, N_ATT, D_ATT), jnp.float32)
    word_feats = jax.random.normal(k3, (B, N_W, D_WORD), jnp.float32)
    attr_feats = jax.random.normal(k4, (B, N_W, D_ATTR), jnp.float32)
    seg_feats = jax.random.normal(k5, (B, N_W, D_SEG), jnp.float32)
    boxes_feats = jax.random.normal(k6, (B, N_ATT, D_BOX), jnp.float32)
    labels = jax.random.randint(k7, (B, T + 1), 1, V, jnp.int32)
    masks = jnp.concatenate(
        [jnp.ones((B, T), jnp.float32),
         (jax.random.uniform(k8, (B, 1)) > 0.5).astype(jnp.float32)], axis=1)
    att_masks = (jax.random.uniform(k9, (B, N_ATT)) > 0.2).astype(jnp.float32)

    # tv_cap=256 forces 2 vocab tiles -> exercises the online-logsumexp path
    # plus the padded-vocab correction (500 is not a multiple of 256).
    out = loss_wrapper_forward(params, fc_feats, att_feats, word_feats, attr_feats,
                               seg_feats, boxes_feats, labels, masks, att_masks,
                               sc_flag=False, tv_cap=256)
    loss = jax.block_until_ready(out["loss"])

    ref_bf16 = reference_loss(params, fc_feats, att_feats, word_feats, attr_feats,
                              seg_feats, boxes_feats, labels, masks, att_masks,
                              compute_dtype=jnp.bfloat16)
    ref_f32 = reference_loss(params, fc_feats, att_feats, word_feats, attr_feats,
                             seg_feats, boxes_feats, labels, masks, att_masks,
                             compute_dtype=jnp.float32)

    assert bool(jnp.isfinite(loss)), loss
    assert jnp.allclose(loss, ref_bf16, rtol=2e-3, atol=2e-3), (loss, ref_bf16)
    assert jnp.allclose(loss, ref_f32, rtol=5e-2, atol=5e-2), (loss, ref_f32)

    print("KERNEL_OK")
</pallas_src>

<mosaic_0001>
module attributes {stable_mosaic.version = 11 : i64} {
  func.func @kernel(%arg0: i32, %arg1: i32, %arg2: memref<128x128xbf16, #tpu.memory_space<vmem>>, %arg3: memref<128x256xbf16, #tpu.memory_space<vmem>>, %arg4: memref<128x1xi32, #tpu.memory_space<vmem>>, %arg5: memref<128x1xf32, #tpu.memory_space<vmem>>, %arg6: memref<128x1xf32, #tpu.memory_space<vmem>>, %arg7: memref<128x1xf32, #tpu.memory_space<vmem>>, %arg8: memref<128x1xf32, #tpu.memory_space<vmem>>, %arg9: memref<128x1xf32, #tpu.memory_space<vmem>>) attributes {dimension_semantics = [#tpu.dimension_semantics<parallel>, #tpu.dimension_semantics<arbitrary>], iteration_bounds = array<i64: 1, 2>, scalar_prefetch = 0 : i64, scratch_operands = 3 : i64, tpu.core_type = #tpu.core_type<tc>, window_params = [{transform_indices = @transform_0, window_bounds = array<i64: 128, 128>}, {transform_indices = @transform_1, window_bounds = array<i64: 128, 256>}, {transform_indices = @transform_2, window_bounds = array<i64: 128, 1>}, {transform_indices = @transform_3, window_bounds = array<i64: 128, 1>}, {transform_indices = @transform_4, window_bounds = array<i64: 128, 1>}]} {
    %c0_i32 = arith.constant 0 : i32
    %0 = arith.cmpi eq, %arg1, %c0_i32 : i32
    %1 = arith.extui %0 : i1 to i32
    %c0_i32_0 = arith.constant 0 : i32
    %2 = arith.cmpi ne, %1, %c0_i32_0 : i32
    scf.if %2 {
      %cst_23 = arith.constant 0xFF800000 : f32
      %39 = vector.broadcast %cst_23 : f32 to vector<128x1xf32>
      %c0_24 = arith.constant 0 : index
      %c0_25 = arith.constant 0 : index
      %40 = vector.load %arg7[%c0_24, %c0_25] : memref<128x1xf32, #tpu.memory_space<vmem>>, vector<128x1xf32>
      tpu.vector_store %arg7[%c0_24, %c0_25], %39 {strides = array<i32>} : memref<128x1xf32, #tpu.memory_space<vmem>>, vector<128x1xf32>,
      %cst_26 = arith.constant 0.000000e+00 : f32
      %41 = vector.broadcast %cst_26 : f32 to vector<128x1xf32>
      %c0_27 = arith.constant 0 : index
      %c0_28 = arith.constant 0 : index
      %42 = vector.load %arg8[%c0_27, %c0_28] : memref<128x1xf32, #tpu.memory_space<vmem>>, vector<128x1xf32>
      tpu.vector_store %arg8[%c0_27, %c0_28], %41 {strides = array<i32>} : memref<128x1xf32, #tpu.memory_space<vmem>>, vector<128x1xf32>,
      %cst_29 = arith.constant 0.000000e+00 : f32
      %43 = vector.broadcast %cst_29 : f32 to vector<128x1xf32>
      %c0_30 = arith.constant 0 : index
      %c0_31 = arith.constant 0 : index
      %44 = vector.load %arg9[%c0_30, %c0_31] : memref<128x1xf32, #tpu.memory_space<vmem>>, vector<128x1xf32>
      tpu.vector_store %arg9[%c0_30, %c0_31], %43 {strides = array<i32>} : memref<128x1xf32, #tpu.memory_space<vmem>>, vector<128x1xf32>,
    } else {
    }
    %c0 = arith.constant 0 : index
    %c0_1 = arith.constant 0 : index
    %3 = vector.load %arg2[%c0, %c0_1] : memref<128x128xbf16, #tpu.memory_space<vmem>>, vector<128x128xbf16>
    %c0_2 = arith.constant 0 : index
    %c0_3 = arith.constant 0 : index
    %4 = vector.load %arg3[%c0_2, %c0_3] : memref<128x256xbf16, #tpu.memory_space<vmem>>, vector<128x256xbf16>
    %cst = arith.constant dense<0.000000e+00> : vector<128x256xf32>
    %5 = tpu.matmul %3, %4, %cst {dimension_numbers = #tpu.dot_dimension_numbers<[1], [0], [0], [1], [0, 0, 1, 1], [], []>} : vector<128x128xbf16>, vector<128x256xbf16>, vector<128x256xf32> -> vector<128x256xf32>
    %c0_4 = arith.constant 0 : index
    %c0_5 = arith.constant 0 : index
    %6 = vector.load %arg7[%c0_4, %c0_5] : memref<128x1xf32, #tpu.memory_space<vmem>>, vector<128x1xf32>
    %cst_6 = arith.constant dense<0xFF800000> : vector<128xf32>
    %7 = vector.multi_reduction <maximumf>, %5, %cst_6 [1] : vector<128x256xf32> to vector<128xf32>
    %8 = vector.shape_cast %7 : vector<128xf32> to vector<128x1xf32>
    %9 = arith.maximumf %6, %8 : vector<128x1xf32>
    %10 = arith.subf %6, %9 : vector<128x1xf32>
    %11 = math.exp %10 : vector<128x1xf32>
    %c0_7 = arith.constant 0 : index
    %c0_8 = arith.constant 0 : index
    %12 = vector.load %arg8[%c0_7, %c0_8] : memref<128x1xf32, #tpu.memory_space<vmem>>, vector<128x1xf32>
    %13 = arith.mulf %11, %12 : vector<128x1xf32>
    %14 = vector.broadcast %9 : vector<128x1xf32> to vector<128x256xf32>
    %15 = arith.subf %5, %14 : vector<128x256xf32>
    %16 = math.exp %15 : vector<128x256xf32>
    %cst_9 = arith.constant dense<0.000000e+00> : vector<128xf32>
    %17 = vector.multi_reduction <add>, %16, %cst_9 [1] : vector<128x256xf32> to vector<128xf32>
    %18 = vector.shape_cast %17 : vector<128xf32> to vector<128x1xf32>
    %19 = arith.addf %13, %18 : vector<128x1xf32>
    %c0_10 = arith.constant 0 : index
    %c0_11 = arith.constant 0 : index
    %20 = vector.load %arg8[%c0_10, %c0_11] : memref<128x1xf32, #tpu.memory_space<vmem>>, vector<128x1xf32>
    tpu.vector_store %arg8[%c0_10, %c0_11], %19 {strides = array<i32>} : memref<128x1xf32, #tpu.memory_space<vmem>>, vector<128x1xf32>,
    %c0_12 = arith.constant 0 : index
    %c0_13 = arith.constant 0 : index
    %21 = vector.load %arg7[%c0_12, %c0_13] : memref<128x1xf32, #tpu.memory_space<vmem>>, vector<128x1xf32>
    tpu.vector_store %arg7[%c0_12, %c0_13], %9 {strides = array<i32>} : memref<128x1xf32, #tpu.memory_space<vmem>>, vector<128x1xf32>,
    %22 = tpu.iota {dimensions = array<i32: 1>} : vector<128x256xi32>
    %c0_14 = arith.constant 0 : index
    %c0_15 = arith.constant 0 : index
    %23 = vector.load %arg4[%c0_14, %c0_15] : memref<128x1xi32, #tpu.memory_space<vmem>>, vector<128x1xi32>
    %c256_i32 = arith.constant 256 : i32
    %24 = arith.muli %arg1, %c256_i32 : i32
    %25 = vector.broadcast %24 : i32 to vector<128x1xi32>
    %26 = arith.subi %23, %25 : vector<128x1xi32>
    %c0_16 = arith.constant 0 : index
    %c0_17 = arith.constant 0 : index
    %27 = vector.load %arg9[%c0_16, %c0_17] : memref<128x1xf32, #tpu.memory_space<vmem>>, vector<128x1xf32>
    %28 = vector.broadcast %26 : vector<128x1xi32> to vector<128x256xi32>
    %29 = arith.cmpi eq, %22, %28 : vector<128x256xi32>
    %cst_18 = arith.constant 0.000000e+00 : f32
    %30 = vector.broadcast %cst_18 : f32 to vector<128x256xf32>
    %31 = arith.select %29, %5, %30 : vector<128x256xi1>, vector<128x256xf32>
    %cst_19 = arith.constant dense<0.000000e+00> : vector<128xf32>
    %32 = vector.multi_reduction <add>, %31, %cst_19 [1] : vector<128x256xf32> to vector<128xf32>
    %33 = vector.shape_cast %32 : vector<128xf32> to vector<128x1xf32>
    %34 = arith.addf %27, %33 : vector<128x1xf32>
    %c0_20 = arith.constant 0 : index
    %c0_21 = arith.constant 0 : index
    %35 = vector.load %arg9[%c0_20, %c0_21] : memref<128x1xf32, #tpu.memory_space<vmem>>, vector<128x1xf32>
    tpu.vector_store %arg9[%c0_20, %c0_21], %34 {strides = array<i32>} : memref<128x1xf32, #tpu.memory_space<vmem>>, vector<128x1xf32>,
    %c1_i32 = arith.constant 1 : i32
    %36 = arith.cmpi eq, %arg1, %c1_i32 : i32
    %37 = arith.extui %36 : i1 to i32
    %c0_i32_22 = arith.constant 0 : i32
    %38 = arith.cmpi ne, %37, %c0_i32_22 : i32
    scf.if %38 {
      %c0_23 = arith.constant 0 : index
      %c0_24 = arith.constant 0 : index
      %39 = vector.load %arg8[%c0_23, %c0_24] : memref<128x1xf32, #tpu.memory_space<vmem>>, vector<128x1xf32>
      %c0_25 = arith.constant 0 : index
      %c0_26 = arith.constant 0 : index
      %40 = vector.load %arg7[%c0_25, %c0_26] : memref<128x1xf32, #tpu.memory_space<vmem>>, vector<128x1xf32>
      %cst_27 = arith.constant 0.000000e+00 : f32
      %41 = vector.broadcast %cst_27 : f32 to vector<128x1xf32>
      %42 = arith.subf %41, %40 : vector<128x1xf32>
      %43 = math.exp %42 : vector<128x1xf32>
      %cst_28 = arith.constant 1.200000e+01 : f32
      %44 = vector.broadcast %cst_28 : f32 to vector<128x1xf32>
      %45 = arith.mulf %44, %43 : vector<128x1xf32>
      %46 = arith.subf %39, %45 : vector<128x1xf32>
      %c0_29 = arith.constant 0 : index
      %c0_30 = arith.constant 0 : index
      %47 = vector.load %arg7[%c0_29, %c0_30] : memref<128x1xf32, #tpu.memory_space<vmem>>, vector<128x1xf32>
      %48 = math.log %46 : vector<128x1xf32>
      %49 = arith.addf %47, %48 : vector<128x1xf32>
      %c0_31 = arith.constant 0 : index
      %c0_32 = arith.constant 0 : index
      %50 = vector.load %arg9[%c0_31, %c0_32] : memref<128x1xf32, #tpu.memory_space<vmem>>, vector<128x1xf32>
      %51 = arith.subf %49, %50 : vector<128x1xf32>
      %c0_33 = arith.constant 0 : index
      %c0_34 = arith.constant 0 : index
      %52 = vector.load %arg5[%c0_33, %c0_34] : memref<128x1xf32, #tpu.memory_space<vmem>>, vector<128x1xf32>
      %53 = arith.mulf %51, %52 : vector<128x1xf32>
      %c0_35 = arith.constant 0 : index
      %c0_36 = arith.constant 0 : index
      %54 = vector.load %arg6[%c0_35, %c0_36] : memref<128x1xf32, #tpu.memory_space<vmem>>, vector<128x1xf32>
      tpu.vector_store %arg6[%c0_35, %c0_36], %53 {strides = array<i32>} : memref<128x1xf32, #tpu.memory_space<vmem>>, vector<128x1xf32>,
    } else {
    }
    return
  }
  func.func @transform_0(%arg0: i32, %arg1: i32) -> (i32, i32) {
    %c0_i32 = arith.constant 0 : i32
    %c0_i32_0 = arith.constant 0 : i32
    return %arg0, %c0_i32 : i32, i32
  }
  func.func @transform_1(%arg0: i32, %arg1: i32) -> (i32, i32) {
    %c0_i32 = arith.constant 0 : i32
    %c0_i32_0 = arith.constant 0 : i32
    return %c0_i32, %arg1 : i32, i32
  }
  func.func @transform_2(%arg0: i32, %arg1: i32) -> (i32, i32) {
    %c0_i32 = arith.constant 0 : i32
    %c0_i32_0 = arith.constant 0 : i32
    return %arg0, %c0_i32 : i32, i32
  }
  func.func @transform_3(%arg0: i32, %arg1: i32) -> (i32, i32) {
    %c0_i32 = arith.constant 0 : i32
    %c0_i32_0 = arith.constant 0 : i32
    return %arg0, %c0_i32 : i32, i32
  }
  func.func @transform_4(%arg0: i32, %arg1: i32) -> (i32, i32) {
    %c0_i32 = arith.constant 0 : i32
    %c0_i32_0 = arith.constant 0 : i32
    return %arg0, %c0_i32 : i32, i32
  }
}

</mosaic_0001>

<llo_original>
// kernel: loss_wrapper_forward.1
$region0: #{loss_wrapper_forward.1}
  #allocation0 [shape = 'u32[]', space=smem, size = 0x4, offset = 0x4, fixed_abs, tag = 'smem constant byte address 0x4 - core index']
  #allocation1 [shape = 'u32[144,128]{1,0:T(1,128)}', space=vmem, size = 0x12000, scoped, tag = 'internal scratch']
  #allocation2 [shape = 'f32[128,1]{1,0:T(8,128)}', space=vmem, size = 0x10000, scoped, tag = 'scratch operand']
  #allocation3 [shape = 'f32[128,1]{1,0:T(8,128)}', space=vmem, size = 0x10000, scoped, tag = 'scratch operand']
  #allocation4 [shape = 'f32[128,1]{1,0:T(8,128)}', space=vmem, size = 0x10000, scoped, tag = 'scratch operand']
  %s0 = inlined_call_operand.vmem [shape: bf16[128,128], index: 0, kind: input, shape index: {}]
  %s1 = inlined_call_operand.vmem [shape: bf16[128,512], index: 1, kind: input, shape index: {}]
  %s2 = inlined_call_operand.vmem [shape: s32[128,1], index: 2, kind: input, shape index: {}]
  %s3 = inlined_call_operand.vmem [shape: f32[128,1], index: 3, kind: input, shape index: {}]
  %s4 = inlined_call_operand.vmem [shape: f32[128,1], index: 4, kind: output, shape index: {}]
  %s5 = sld [smem:[#allocation0]]
  $region95: #{loss_wrapper_forward.1} parent=0
    _
  %s7 = ssub.s32 1, %s5
  %s8 = scalar_select 0, %s7, %s5
  $region1: #{loss_wrapper_forward.1} parent=0
    #allocation5 [shape = 'u8[131072]{0}', space=vmem, size = 0x20000, scoped, tag = 'input window, operand 1']
    loop: start=0, step=1, limit=4
    $region2: #{loss_wrapper_forward.1} parent=1 // loop_pre_header
      _
    $region3: #{loss_wrapper_forward.1} parent=1 // loop_header
      %s10 = sphi 0, %s14
      %p11 = scmp.ge.s32.totalorder %s10, 4
      %s17 = sphi 0, %s29
      %s18 = sphi 0, %s25
      %s19 = sphi 0, %s17
      %s20 = sphi 0, %s18
      %s21 = sphi 0, %s19
      %s22 = sphi 0, %s20
      %s32 = sphi 0, %s34
      %s35 = sphi 0, %s32
      %s36 = sphi 0, %s35
      %s52 = sphi 0, %s36
      %s58 = sphi 0, %s60
      %s61 = sphi 0, %s58
      %s62 = sphi 0, %s61
      %s78 = sphi 0, %s62
      %s84 = sphi 0, %s86
      %s87 = sphi 0, %s84
      %s88 = sphi 0, %s87
      %s104 = sphi 0, %s88
      %s110 = sphi 0, %s112
      %s113 = sphi 0, %s110
      %s114 = sphi 0, %s113
      %s130 = sphi 0, %s114
      %s136 = sphi 0, %s138
      %s139 = sphi 0, %s136
      %s140 = sphi 0, %s139
      %s156 = sphi 0, %s140
    $region4: #{loss_wrapper_forward.1} parent=1 // loop_header_branch
      %13 = sbr.rel (%p11) target = $region8
    $region5: #{loss_wrapper_forward.1} parent=1 // loop_body
      %s15 = ssub.s32 %s10, 1
      %s16 = ssub.s32 %s10, 2
      %s23 = sadd.s32 1, %s18
      %p24 = scmp.ge.s32.totalorder %s23, 2
      %s25 = scalar_select %p24, 0, %s23
      %s26 = sadd.s32 1, %s17
      %s27 = scalar_select %p24, %s26, %s17
      %p28 = scmp.ge.s32.totalorder %s27, 1
      %s29 = scalar_select %p28, 0, %s27
      %s30 = ssub.s32 %s17, %s29
      %p31 = scmp.eq.s32.totalorder %s30, 0
      %s33 = sadd.s32 %s32, 1
      %s34 = scalar_select %p31, %s32, %s33
      %p37 = pneg %p31
      %p38 = scmp.eq.s32.totalorder %s10, 1
      %p39 = por %p37, %p38
      %p40 = scmp.ne.s32.totalorder %s32, %s35
      %p41 = scmp.eq.s32.totalorder %s10, 0
      %p42 = por %p40, %p41
      %p43 = scmp.ne.s32.totalorder %s32, %s35
      %p44 = scmp.eq.s32.totalorder %s15, 1
      %p45 = por %p43, %p44
      %p46 = scmp.ne.s32.totalorder %s35, %s36
      %p47 = scmp.eq.s32.totalorder %s15, 0
      %p48 = por %p46, %p47
      %p49 = scmp.ne.s32.totalorder %s35, %s36
      %p50 = scmp.eq.s32.totalorder %s16, 1
      %p51 = por %p49, %p50
      %p53 = scmp.ne.s32.totalorder %s36, %s52
      %p54 = scmp.eq.s32.totalorder %s16, 0
      %p55 = por %p53, %p54
      %s56 = ssub.s32 %s18, %s25
      %p57 = scmp.eq.s32.totalorder %s56, 0
      %s59 = sadd.s32 %s58, 1
      %s60 = scalar_select %p57, %s58, %s59
      %p63 = pneg %p57
      %p64 = scmp.eq.s32.totalorder %s10, 1
      %p65 = por %p63, %p64
      %p66 = scmp.ne.s32.totalorder %s58, %s61
      %p67 = scmp.eq.s32.totalorder %s10, 0
      %p68 = por %p66, %p67
      %p69 = scmp.ne.s32.totalorder %s58, %s61
      %p70 = scmp.eq.s32.totalorder %s15, 1
      %p71 = por %p69, %p70
      %p72 = scmp.ne.s32.totalorder %s61, %s62
      %p73 = scmp.eq.s32.totalorder %s15, 0
      %p74 = por %p72, %p73
      %p75 = scmp.ne.s32.totalorder %s61, %s62
      %p76 = scmp.eq.s32.totalorder %s16, 1
      %p77 = por %p75, %p76
      %p79 = scmp.ne.s32.totalorder %s62, %s78
      %p80 = scmp.eq.s32.totalorder %s16, 0
      %p81 = por %p79, %p80
      %s82 = ssub.s32 %s17, %s29
      %p83 = scmp.eq.s32.totalorder %s82, 0
      %s85 = sadd.s32 %s84, 1
      %s86 = scalar_select %p83, %s84, %s85
      %p89 = pneg %p83
      %p90 = scmp.eq.s32.totalorder %s10, 1
      %p91 = por %p89, %p90
      %p92 = scmp.ne.s32.totalorder %s84, %s87
      %p93 = scmp.eq.s32.totalorder %s10, 0
      %p94 = por %p92, %p93
      %p95 = scmp.ne.s32.totalorder %s84, %s87
      %p96 = scmp.eq.s32.totalorder %s15, 1
      %p97 = por %p95, %p96
      %p98 = scmp.ne.s32.totalorder %s87, %s88
      %p99 = scmp.eq.s32.totalorder %s15, 0
      %p100 = por %p98, %p99
      %p101 = scmp.ne.s32.totalorder %s87, %s88
      %p102 = scmp.eq.s32.totalorder %s16, 1
      %p103 = por %p101, %p102
      %p105 = scmp.ne.s32.totalorder %s88, %s104
      %p106 = scmp.eq.s32.totalorder %s16, 0
      %p107 = por %p105, %p106
      %s108 = ssub.s32 %s17, %s29
      %p109 = scmp.eq.s32.totalorder %s108, 0
      %s111 = sadd.s32 %s110, 1
      %s112 = scalar_select %p109, %s110, %s111
      %p115 = pneg %p109
      %p116 = scmp.eq.s32.totalorder %s10, 1
      %p117 = por %p115, %p116
      %p118 = scmp.ne.s32.totalorder %s110, %s113
      %p119 = scmp.eq.s32.totalorder %s10, 0
      %p120 = por %p118, %p119
      %p121 = scmp.ne.s32.totalorder %s110, %s113
      %p122 = scmp.eq.s32.totalorder %s15, 1
      %p123 = por %p121, %p122
      %p124 = scmp.ne.s32.totalorder %s113, %s114
      %p125 = scmp.eq.s32.totalorder %s15, 0
      %p126 = por %p124, %p125
      %p127 = scmp.ne.s32.totalorder %s113, %s114
      %p128 = scmp.eq.s32.totalorder %s16, 1
      %p129 = por %p127, %p128
      %p131 = scmp.ne.s32.totalorder %s114, %s130
      %p132 = scmp.eq.s32.totalorder %s16, 0
      %p133 = por %p131, %p132
      %s134 = ssub.s32 %s17, %s29
      %p135 = scmp.eq.s32.totalorder %s134, 0
      %s137 = sadd.s32 %s136, 1
      %s138 = scalar_select %p135, %s136, %s137
      %p141 = pneg %p135
      %p142 = scmp.eq.s32.totalorder %s10, 1
      %p143 = por %p141, %p142
      %p144 = scmp.ne.s32.totalorder %s136, %s139
      %p145 = scmp.eq.s32.totalorder %s10, 0
      %p146 = por %p144, %p145
      %p147 = scmp.ne.s32.totalorder %s136, %s139
      %p148 = scmp.eq.s32.totalorder %s15, 1
      %p149 = por %p147, %p148
      %p150 = scmp.ne.s32.totalorder %s139, %s140
      %p151 = scmp.eq.s32.totalorder %s15, 0
      %p152 = por %p150, %p151
      %p153 = scmp.ne.s32.totalorder %s139, %s140
      %p154 = scmp.eq.s32.totalorder %s16, 1
      %p155 = por %p153, %p154
      %p157 = scmp.ne.s32.totalorder %s140, %s156
      %p158 = scmp.eq.s32.totalorder %s16, 0
      %p159 = por %p157, %p158
      %p160 = scmp.le.s32.totalorder 1, %s10
      %p161 = scmp.lt.s32.totalorder %s10, 3
      %p162 = pnand %p160, %p161
      %p163 = pneg %p162
      // Predicated region
      $region9: #{loss_wrapper_forward.1} parent=5 // pred_check
        _
      $region10: #{loss_wrapper_forward.1} parent=5 // pred_check_branch
        %165 = sbr.rel (%p162) target = $region12
      $region11: #{loss_wrapper_forward.1} parent=5 // pred_region
        %s166 = ssub.s32 %s10, 1
        // Predicated region
        $region13: #{loss_wrapper_forward.1} parent=11 // pred_check
          %p167 = pneg %p48
        $region14: #{loss_wrapper_forward.1} parent=11 // pred_check_branch
          %169 = sbr.rel (%p167) target = $region16
        $region15: #{loss_wrapper_forward.1} parent=11 // pred_region
          %s170 = smul.u32 16, %s19
          %p171 = scmp.lt.s32.totalorder %s170, 15
          %s172 = scalar_select %p171, %s170, 15
          %s173 = smul.addr %s172, 4
          %s174 = scalar_lea.vmem %s0, %s173
          %s175 = smul.u32 16, %s19
        $region16: #{loss_wrapper_forward.1} parent=11 // pred_fallthru
          _
        // Predicated region
        $region17: #{loss_wrapper_forward.1} parent=11 // pred_check
          %p176 = pneg %p100
        $region18: #{loss_wrapper_forward.1} parent=11 // pred_check_branch
          %178 = sbr.rel (%p176) target = $region20
        $region19: #{loss_wrapper_forward.1} parent=11 // pred_region
          %s179 = smul.u32 16, %s19
          %p180 = scmp.lt.s32.totalorder %s179, 15
          %s181 = scalar_select %p180, %s179, 15
          %s182 = smul.addr %s181, 8
          %s183 = scalar_lea.vmem %s2, %s182
          %s184 = smul.u32 16, %s19
        $region20: #{loss_wrapper_forward.1} parent=11 // pred_fallthru
          _
        // Predicated region
        $region21: #{loss_wrapper_forward.1} parent=11 // pred_check
          %p185 = pneg %p126
        $region22: #{loss_wrapper_forward.1} parent=11 // pred_check_branch
          %187 = sbr.rel (%p185) target = $region24
        $region23: #{loss_wrapper_forward.1} parent=11 // pred_region
          %s188 = smul.u32 16, %s19
          %p189 = scmp.lt.s32.totalorder %s188, 15
          %s190 = scalar_select %p189, %s188, 15
          %s191 = smul.addr %s190, 8
          %s192 = scalar_lea.vmem %s3, %s191
          %s193 = smul.u32 16, %s19
        $region24: #{loss_wrapper_forward.1} parent=11 // pred_fallthru
          _
      $region12: #{loss_wrapper_forward.1} parent=5 // pred_fallthru
        _
      %p194 = scmp.lt.s32.totalorder %s10, 2
      // Predicated region
      $region25: #{loss_wrapper_forward.1} parent=5 // pred_check
        %p195 = pneg %p194
      $region26: #{loss_wrapper_forward.1} parent=5 // pred_check_branch
        %197 = sbr.rel (%p195) target = $region28
      $region27: #{loss_wrapper_forward.1} parent=5 // pred_region
        // Predicated region
        $region29: #{loss_wrapper_forward.1} parent=27 // pred_check
          %p198 = pneg %p68
        $region30: #{loss_wrapper_forward.1} parent=27 // pred_check_branch
          %200 = sbr.rel (%p198) target = $region32
        $region31: #{loss_wrapper_forward.1} parent=27 // pred_region
          %s201 = sand.u32 %s58, 1
          %s202 = sand.u32 %s58, 1
          %s203 = smul.addr %s202, 128
          %s204 = scalar_lea.vmem [#allocation5], %s203
          %s205 = smul.u32 2, %s18
          %s206 = smul.addr %s205, 4
          %s207 = scalar_lea.vmem %s1, %s206
          // Predicated region
          $region33: #{loss_wrapper_forward.1} parent=31 // pred_check
            _
          $region34: #{loss_wrapper_forward.1} parent=31 // pred_check_branch
            %209 = sbr.rel (0) target = $region36
          $region35: #{loss_wrapper_forward.1} parent=31 // pred_region
            // Predicated region
            $region37: #{loss_wrapper_forward.1} parent=35 // pred_check
              _
            $region38: #{loss_wrapper_forward.1} parent=35 // pred_check_branch
              %211 = sbr.rel (0) target = $region40
            $region39: #{loss_wrapper_forward.1} parent=35 // pred_region
              // Predicated region
              $region52: #{loss_wrapper_forward.1} parent=39 // pred_check
                _
              $region53: #{loss_wrapper_forward.1} parent=39 // pred_check_branch
                %257 = sbr.rel (0) target = $region55
              $region54: #{loss_wrapper_forward.1} parent=39 // pred_region
                loop: start=0, step=1, limit=1
                $region56: #{loss_wrapper_forward.1} parent=54 // loop_pre_header
                  _
                $region57: #{loss_wrapper_forward.1} parent=54 // loop_header
                  %s259 = sphi 0, %s263
                  %p260 = scmp.ge.s32.totalorder %s259, 1
                  %s264 = sphi %s207, %s207
                  %s265 = sphi %s204, %s204
                $region58: #{loss_wrapper_forward.1} parent=54 // loop_header_branch
                  %262 = sbr.rel (%p260) target = $region62
                $region59: #{loss_wrapper_forward.1} parent=54 // loop_body
                  %v266 = vld [vmem:[%s264] sm:$0xff]
                  %267 = vst [vmem:[%s265] sm:$0xff] %v266
                  %v268 = vld [vmem:[%s264 + $0x10] sm:$0xff]
                  %269 = vst [vmem:[%s265 + $0x8] sm:$0xff] %v268
                  %v270 = vld [vmem:[%s264 + $0x20] sm:$0xff]
                  %271 = vst [vmem:[%s265 + $0x10] sm:$0xff] %v270
                  %v272 = vld [vmem:[%s264 + $0x30] sm:$0xff]
                  %273 = vst [vmem:[%s265 + $0x18] sm:$0xff] %v272
                  %v274 = vld [vmem:[%s264 + $0x40] sm:$0xff]
                  %275 = vst [vmem:[%s265 + $0x20] sm:$0xff] %v274
                  %v276 = vld [vmem:[%s264 + $0x50] sm:$0xff]
                  %277 = vst [vmem:[%s265 + $0x28] sm:$0xff] %v276
                  %v278 = vld [vmem:[%s264 + $0x60] sm:$0xff]
                  %279 = vst [vmem:[%s265 + $0x30] sm:$0xff] %v278
                  %v280 = vld [vmem:[%s264 + $0x70] sm:$0xff]
                  %281 = vst [vmem:[%s265 + $0x38] sm:$0xff] %v280
                  %v282 = vld [vmem:[%s264 + $0x80] sm:$0xff]
                  %283 = vst [vmem:[%s265 + $0x40] sm:$0xff] %v282
                  %v284 = vld [vmem:[%s264 + $0x90] sm:$0xff]
                  %285 = vst [vmem:[%s265 + $0x48] sm:$0xff] %v284
                  %v286 = vld [vmem:[%s264 + $0xa0] sm:$0xff]
                  %287 = vst [vmem:[%s265 + $0x50] sm:$0xff] %v286
                  %v288 = vld [vmem:[%s264 + $0xb0] sm:$0xff]
                  %289 = vst [vmem:[%s265 + $0x58] sm:$0xff] %v288
                  %v290 = vld [vmem:[%s264 + $0xc0] sm:$0xff]
                  %291 = vst [vmem:[%s265 + $0x60] sm:$0xff] %v290
                  %v292 = vld [vmem:[%s264 + $0xd0] sm:$0xff]
                  %293 = vst [vmem:[%s265 + $0x68] sm:$0xff] %v292
                  %v294 = vld [vmem:[%s264 + $0xe0] sm:$0xff]
                  %295 = vst [vmem:[%s265 + $0x70] sm:$0xff] %v294
                  %v296 = vld [vmem:[%s264 + $0xf0] sm:$0xff]
                  %297 = vst [vmem:[%s265 + $0x78] sm:$0xff] %v296
                $region60: #{loss_wrapper_forward.1} parent=54 // loop_footer
                  %s263 = sadd.s32 1, %s259
                $region61: #{loss_wrapper_forward.1} parent=54 // loop_footer_branch
                  %258 = sbr.rel target = $region57
                $region62: #{loss_wrapper_forward.1} parent=54 // loop_exit
                  _
              $region55: #{loss_wrapper_forward.1} parent=39 // pred_fallthru
                _
              // Predicated region
              $region63: #{loss_wrapper_forward.1} parent=39 // pred_check
                _
              $region64: #{loss_wrapper_forward.1} parent=39 // pred_check_branch
                %299 = sbr.rel target = $region66
              $region65: #{loss_wrapper_forward.1} parent=39 // pred_region
                _
              $region66: #{loss_wrapper_forward.1} parent=39 // pred_fallthru
                _
            $region40: #{loss_wrapper_forward.1} parent=35 // pred_fallthru
              _
            // Predicated region
            $region41: #{loss_wrapper_forward.1} parent=35 // pred_check
              _
            $region42: #{loss_wrapper_forward.1} parent=35 // pred_check_branch
              %213 = sbr.rel target = $region44
            $region43: #{loss_wrapper_forward.1} parent=35 // pred_region
              %s215 = ssub.s32 256, 1
              loop: start=0, step=1, limit=1
              $region45: #{loss_wrapper_forward.1} parent=43 // loop_pre_header
                _
              $region46: #{loss_wrapper_forward.1} parent=43 // loop_header
                %s217 = sphi 0, %s221
                %p218 = scmp.ge.s32.totalorder %s217, 1
                %s222 = sphi %s207, %s207
                %s223 = sphi %s204, %s204
              $region47: #{loss_wrapper_forward.1} parent=43 // loop_header_branch
                %220 = sbr.rel (%p218) target = $region51
              $region48: #{loss_wrapper_forward.1} parent=43 // loop_body
                %v224 = vld [vmem:[%s222] sm:%s215]
                %225 = vst [vmem:[%s223] sm:%s215] %v224
                %v226 = vld [vmem:[%s222 + $0x10] sm:%s215]
                %227 = vst [vmem:[%s223 + $0x8] sm:%s215] %v226
                %v228 = vld [vmem:[%s222 + $0x20] sm:%s215]
                %229 = vst [vmem:[%s223 + $0x10] sm:%s215] %v228
                %v230 = vld [vmem:[%s222 + $0x30] sm:%s215]
                %231 = vst [vmem:[%s223 + $0x18] sm:%s215] %v230
                %v232 = vld [vmem:[%s222 + $0x40] sm:%s215]
                %233 = vst [vmem:[%s223 + $0x20] sm:%s215] %v232
                %v234 = vld [vmem:[%s222 + $0x50] sm:%s215]
                %235 = vst [vmem:[%s223 + $0x28] sm:%s215] %v234
                %v236 = vld [vmem:[%s222 + $0x60] sm:%s215]
                %237 = vst [vmem:[%s223 + $0x30] sm:%s215] %v236
                %v238 = vld [vmem:[%s222 + $0x70] sm:%s215]
                %239 = vst [vmem:[%s223 + $0x38] sm:%s215] %v238
                %v240 = vld [vmem:[%s222 + $0x80] sm:%s215]
                %241 = vst [vmem:[%s223 + $0x40] sm:%s215] %v240
                %v242 = vld [vmem:[%s222 + $0x90] sm:%s215]
                %243 = vst [vmem:[%s223 + $0x48] sm:%s215] %v242
                %v244 = vld [vmem:[%s222 + $0xa0] sm:%s215]
                %245 = vst [vmem:[%s223 + $0x50] sm:%s215] %v244
                %v246 = vld [vmem:[%s222 + $0xb0] sm:%s215]
                %247 = vst [vmem:[%s223 + $0x58] sm:%s215] %v246
                %v248 = vld [vmem:[%s222 + $0xc0] sm:%s215]
                %249 = vst [vmem:[%s223 + $0x60] sm:%s215] %v248
                %v250 = vld [vmem:[%s222 + $0xd0] sm:%s215]
                %251 = vst [vmem:[%s223 + $0x68] sm:%s215] %v250
                %v252 = vld [vmem:[%s222 + $0xe0] sm:%s215]
                %253 = vst [vmem:[%s223 + $0x70] sm:%s215] %v252
                %v254 = vld [vmem:[%s222 + $0xf0] sm:%s215]
                %255 = vst [vmem:[%s223 + $0x78] sm:%s215] %v254
              $region49: #{loss_wrapper_forward.1} parent=43 // loop_footer
                %s221 = sadd.s32 1, %s217
              $region50: #{loss_wrapper_forward.1} parent=43 // loop_footer_branch
                %216 = sbr.rel target = $region46
              $region51: #{loss_wrapper_forward.1} parent=43 // loop_exit
                _
            $region44: #{loss_wrapper_forward.1} parent=35 // pred_fallthru
              _
          $region36: #{loss_wrapper_forward.1} parent=31 // pred_fallthru
            _
          %300 = vnop
        $region32: #{loss_wrapper_forward.1} parent=27 // pred_fallthru
          _
      $region28: #{loss_wrapper_forward.1} parent=5 // pred_fallthru
        _
      %p301 = scmp.le.s32.totalorder 1, %s10
      %p302 = scmp.lt.s32.totalorder %s10, 3
      %p303 = pnand %p301, %p302
      %p304 = pneg %p303
      // Predicated region
      $region67: #{loss_wrapper_forward.1} parent=5 // pred_check
        _
      $region68: #{loss_wrapper_forward.1} parent=5 // pred_check_branch
        %306 = sbr.rel (%p303) target = $region70
      $region69: #{loss_wrapper_forward.1} parent=5 // pred_region
        %s307 = ssub.s32 %s10, 1
        %s308 = sand.u32 %s61, 1
        %s309 = sand.u32 %s61, 1
        %s310 = smul.addr %s309, 128
        %s311 = scalar_lea.vmem [#allocation5], %s310
        // Predicated region
        $region71: #{loss_wrapper_forward.1} parent=69 // pred_check
          %p312 = pneg %p74
        $region72: #{loss_wrapper_forward.1} parent=69 // pred_check_branch
          %314 = sbr.rel (%p312) target = $region74
        $region73: #{loss_wrapper_forward.1} parent=69 // pred_region
          _
        $region74: #{loss_wrapper_forward.1} parent=69 // pred_fallthru
          _
        %s315 = smul.u32 16, %s19
        %p316 = scmp.lt.s32.totalorder %s315, 15
        %s317 = scalar_select %p316, %s315, 15
        %s318 = smul.addr %s317, 4
        %s319 = scalar_lea.vmem %s0, %s318
        %p320 = pneg %p48
        %p321 = pneg %p45
        %s322 = sand.u32 %s61, 1
        %s323 = sand.u32 %s61, 1
        %s324 = smul.addr %s323, 128
        %s325 = scalar_lea.vmem [#allocation5], %s324
        %p326 = pneg %p74
        %p327 = pneg %p71
        %s328 = smul.u32 16, %s19
        %p329 = scmp.lt.s32.totalorder %s328, 15
        %s330 = scalar_select %p329, %s328, 15
        %s331 = smul.addr %s330, 8
        %s332 = scalar_lea.vmem %s2, %s331
        %p333 = pneg %p100
        %p334 = pneg %p97
        %s335 = smul.u32 16, %s19
        %p336 = scmp.lt.s32.totalorder %s335, 15
        %s337 = scalar_select %p336, %s335, 15
        %s338 = smul.addr %s337, 8
        %s339 = scalar_lea.vmem %s3, %s338
        %p340 = pneg %p126
        %p341 = pneg %p123
        %p342 = pneg %p152
        %p343 = pneg %p149
        %s344 = smul.u32 16, %s19
        %p345 = scmp.lt.s32.totalorder %s344, 15
        %s346 = scalar_select %p345, %s344, 15
        %s347 = smul.addr %s346, 8
        %s348 = scalar_lea.vmem %s4, %s347
        %s349 = smul.u32 16, %s19
        %p350 = scmp.lt.s32.totalorder %s349, 15
        %s351 = scalar_select %p350, %s349, 15
        %s352 = smul.addr %s351, 4
        %s353 = scalar_lea.vmem %s0, %s352
        %s354 = smul.u32 16, %s19
        %s355 = smul.u32 2, %s20
        %s356 = smul.u32 16, %s19
        %p357 = scmp.lt.s32.totalorder %s356, 15
        %s358 = scalar_select %p357, %s356, 15
        %s359 = smul.addr %s358, 8
        %s360 = scalar_lea.vmem %s2, %s359
        %s361 = smul.u32 16, %s19
        %s362 = smul.u32 16, %s19
        %p363 = scmp.lt.s32.totalorder %s362, 15
        %s364 = scalar_select %p363, %s362, 15
        %s365 = smul.addr %s364, 8
        %s366 = scalar_lea.vmem %s3, %s365
        %s367 = smul.u32 16, %s19
        %s368 = smul.u32 16, %s19
        %p369 = scmp.lt.s32.totalorder %s368, 15
        %s370 = scalar_select %p369, %s368, 15
        %s371 = smul.addr %s370, 8
        %s372 = scalar_lea.vmem %s4, %s371
        %s373 = smul.u32 16, %s19
        %p375 = scmp.eq.s32.totalorder %s20, 0
        // Predicated region
        $region75: #{loss_wrapper_forward.1} parent=69 // pred_check
          %p376 = pneg %p375
        $region76: #{loss_wrapper_forward.1} parent=69 // pred_check_branch
          %378 = sbr.rel (%p376) target = $region78
        $region77: #{loss_wrapper_forward.1} parent=69 // pred_region
          %vm379 = vcmask 7168
          %380 = vst.msk [vmem:[#allocation2] sm:$0xff] %vm379, -inf
          %381 = vst.msk [vmem:[#allocation2 + $0x8] sm:$0xff] %vm379, -inf
          %382 = vst.msk [vmem:[#allocation2 + $0x10] sm:$0xff] %vm379, -inf
          %383 = vst.msk [vmem:[#allocation2 + $0x18] sm:$0xff] %vm379, -inf
          %384 = vst.msk [vmem:[#allocation2 + $0x20] sm:$0xff] %vm379, -inf
          %385 = vst.msk [vmem:[#allocation2 + $0x28] sm:$0xff] %vm379, -inf
          %386 = vst.msk [vmem:[#allocation2 + $0x30] sm:$0xff] %vm379, -inf
          %387 = vst.msk [vmem:[#allocation2 + $0x38] sm:$0xff] %vm379, -inf
          %388 = vst.msk [vmem:[#allocation2 + $0x40] sm:$0xff] %vm379, -inf
          %389 = vst.msk [vmem:[#allocation2 + $0x48] sm:$0xff] %vm379, -inf
          %390 = vst.msk [vmem:[#allocation2 + $0x50] sm:$0xff] %vm379, -inf
          %391 = vst.msk [vmem:[#allocation2 + $0x58] sm:$0xff] %vm379, -inf
          %392 = vst.msk [vmem:[#allocation2 + $0x60] sm:$0xff] %vm379, -inf
          %393 = vst.msk [vmem:[#allocation2 + $0x68] sm:$0xff] %vm379, -inf
          %394 = vst.msk [vmem:[#allocation2 + $0x70] sm:$0xff] %vm379, -inf
          %395 = vst.msk [vmem:[#allocation2 + $0x78] sm:$0xff] %vm379, -inf
          %396 = vst.msk [vmem:[#allocation3] sm:$0xff] %vm379, 0.0
          %397 = vst.msk [vmem:[#allocation3 + $0x8] sm:$0xff] %vm379, 0.0
          %398 = vst.msk [vmem:[#allocation3 + $0x10] sm:$0xff] %vm379, 0.0
          %399 = vst.msk [vmem:[#allocation3 + $0x18] sm:$0xff] %vm379, 0.0
          %400 = vst.msk [vmem:[#allocation3 + $0x20] sm:$0xff] %vm379, 0.0
          %401 = vst.msk [vmem:[#allocation3 + $0x28] sm:$0xff] %vm379, 0.0
          %402 = vst.msk [vmem:[#allocation3 + $0x30] sm:$0xff] %vm379, 0.0
          %403 = vst.msk [vmem:[#allocation3 + $0x38] sm:$0xff] %vm379, 0.0
          %404 = vst.msk [vmem:[#allocation3 + $0x40] sm:$0xff] %vm379, 0.0
          %405 = vst.msk [vmem:[#allocation3 + $0x48] sm:$0xff] %vm379, 0.0
          %406 = vst.msk [vmem:[#allocation3 + $0x50] sm:$0xff] %vm379, 0.0
          %407 = vst.msk [vmem:[#allocation3 + $0x58] sm:$0xff] %vm379, 0.0
          %408 = vst.msk [vmem:[#allocation3 + $0x60] sm:$0xff] %vm379, 0.0
          %409 = vst.msk [vmem:[#allocation3 + $0x68] sm:$0xff] %vm379, 0.0
          %410 = vst.msk [vmem:[#allocation3 + $0x70] sm:$0xff] %vm379, 0.0
          %411 = vst.msk [vmem:[#allocation3 + $0x78] sm:$0xff] %vm379, 0.0
          %412 = vst.msk [vmem:[#allocation4] sm:$0xff] %vm379, 0.0
          %413 = vst.msk [vmem:[#allocation4 + $0x8] sm:$0xff] %vm379, 0.0
          %414 = vst.msk [vmem:[#allocation4 + $0x10] sm:$0xff] %vm379, 0.0
          %415 = vst.msk [vmem:[#allocation4 + $0x18] sm:$0xff] %vm379, 0.0
          %416 = vst.msk [vmem:[#allocation4 + $0x20] sm:$0xff] %vm379, 0.0
          %417 = vst.msk [vmem:[#allocation4 + $0x28] sm:$0xff] %vm379, 0.0
          %418 = vst.msk [vmem:[#allocation4 + $0x30] sm:$0xff] %vm379, 0.0
          %419 = vst.msk [vmem:[#allocation4 + $0x38] sm:$0xff] %vm379, 0.0
          %420 = vst.msk [vmem:[#allocation4 + $0x40] sm:$0xff] %vm379, 0.0
          %421 = vst.msk [vmem:[#allocation4 + $0x48] sm:$0xff] %vm379, 0.0
          %422 = vst.msk [vmem:[#allocation4 + $0x50] sm:$0xff] %vm379, 0.0
          %423 = vst.msk [vmem:[#allocation4 + $0x58] sm:$0xff] %vm379, 0.0
          %424 = vst.msk [vmem:[#allocation4 + $0x60] sm:$0xff] %vm379, 0.0
          %425 = vst.msk [vmem:[#allocation4 + $0x68] sm:$0xff] %vm379, 0.0
          %426 = vst.msk [vmem:[#allocation4 + $0x70] sm:$0xff] %vm379, 0.0
          %427 = vst.msk [vmem:[#allocation4 + $0x78] sm:$0xff] %vm379, 0.0
        $region78: #{loss_wrapper_forward.1} parent=69 // pred_fallthru
          _
        %v428 = vld [vmem:[%s353] sm:$0xf]
        %v429 = vld [vmem:[%s353 + $0x4] sm:$0xf]
        %v430 = vld [vmem:[%s353 + $0x8] sm:$0xf]
        %v431 = vld [vmem:[%s353 + $0xc] sm:$0xf]
        %v432 = vld [vmem:[%s353 + $0x10] sm:$0xf]
        %v433 = vld [vmem:[%s353 + $0x14] sm:$0xf]
        %v434 = vld [vmem:[%s353 + $0x18] sm:$0xf]
        %v435 = vld [vmem:[%s353 + $0x1c] sm:$0xf]
        %v436 = vld [vmem:[%s353 + $0x20] sm:$0xf]
        %v437 = vld [vmem:[%s353 + $0x24] sm:$0xf]
        %v438 = vld [vmem:[%s353 + $0x28] sm:$0xf]
        %v439 = vld [vmem:[%s353 + $0x2c] sm:$0xf]
        %v440 = vld [vmem:[%s353 + $0x30] sm:$0xf]
        %v441 = vld [vmem:[%s353 + $0x34] sm:$0xf]
        %v442 = vld [vmem:[%s353 + $0x38] sm:$0xf]
        %v443 = vld [vmem:[%s353 + $0x3c] sm:$0xf]
        %v444 = vld [vmem:[%s311] sm:$0xff]
        %v445 = vld [vmem:[%s311 + $0x8] sm:$0xff]
        %v446 = vld [vmem:[%s311 + $0x10] sm:$0xff]
        %v447 = vld [vmem:[%s311 + $0x18] sm:$0xff]
        %v448 = vld [vmem:[%s311 + $0x20] sm:$0xff]
        %v449 = vld [vmem:[%s311 + $0x28] sm:$0xff]
        %v450 = vld [vmem:[%s311 + $0x30] sm:$0xff]
        %v451 = vld [vmem:[%s311 + $0x38] sm:$0xff]
        %v452 = vld [vmem:[%s311 + $0x40] sm:$0xff]
        %v453 = vld [vmem:[%s311 + $0x48] sm:$0xff]
        %v454 = vld [vmem:[%s311 + $0x50] sm:$0xff]
        %v455 = vld [vmem:[%s311 + $0x58] sm:$0xff]
        %v456 = vld [vmem:[%s311 + $0x60] sm:$0xff]
        %v457 = vld [vmem:[%s311 + $0x68] sm:$0xff]
        %v458 = vld [vmem:[%s311 + $0x70] sm:$0xff]
        %v459 = vld [vmem:[%s311 + $0x78] sm:$0xff]
        %v476 = vunpack.c.l.b16 %v428
        %v477 = vunpack.c.l.b16 %v429
        %v478 = vunpack.c.l.b16 %v430
        %v479 = vunpack.c.l.b16 %v431
        %v480 = vunpack.c.l.b16 %v432
        %v481 = vunpack.c.l.b16 %v433
        %v482 = vunpack.c.l.b16 %v434
        %v483 = vunpack.c.l.b16 %v435
        %v484 = vunpack.c.l.b16 %v436
        %v485 = vunpack.c.l.b16 %v437
        %v486 = vunpack.c.l.b16 %v438
        %v487 = vunpack.c.l.b16 %v439
        %v488 = vunpack.c.l.b16 %v440
        %v489 = vunpack.c.l.b16 %v441
        %v490 = vunpack.c.l.b16 %v442
        %v491 = vunpack.c.l.b16 %v443
        %v492 = vpack.c.b16 %v477, %v476
        %v493 = vpack.c.b16 %v479, %v478
        %v494 = vpack.c.b16 %v481, %v480
        %v495 = vpack.c.b16 %v483, %v482
        %v496 = vpack.c.b16 %v485, %v484
        %v497 = vpack.c.b16 %v487, %v486
        %v498 = vpack.c.b16 %v489, %v488
        %v499 = vpack.c.b16 %v491, %v490
        %v524 = vunpack.c.l.b16 %v444
        %v525 = vunpack.c.h.b16 %v444
        %v526 = vunpack.c.l.b16 %v445
        %v527 = vunpack.c.h.b16 %v445
        %v528 = vunpack.c.l.b16 %v446
        %v529 = vunpack.c.h.b16 %v446
        %v530 = vunpack.c.l.b16 %v447
        %v531 = vunpack.c.h.b16 %v447
        %v532 = vunpack.c.l.b16 %v448
        %v533 = vunpack.c.h.b16 %v448
        %v534 = vunpack.c.l.b16 %v449
        %v535 = vunpack.c.h.b16 %v449
        %v536 = vunpack.c.l.b16 %v450
        %v537 = vunpack.c.h.b16 %v450
        %v538 = vunpack.c.l.b16 %v451
        %v539 = vunpack.c.h.b16 %v451
        %v540 = vunpack.c.l.b16 %v452
        %v541 = vunpack.c.h.b16 %v452
        %v542 = vunpack.c.l.b16 %v453
        %v543 = vunpack.c.h.b16 %v453
        %v544 = vunpack.c.l.b16 %v454
        %v545 = vunpack.c.h.b16 %v454
        %v546 = vunpack.c.l.b16 %v455
        %v547 = vunpack.c.h.b16 %v455
        %v548 = vunpack.c.l.b16 %v456
        %v549 = vunpack.c.h.b16 %v456
        %v550 = vunpack.c.l.b16 %v457
        %v551 = vunpack.c.h.b16 %v457
        %v552 = vunpack.c.l.b16 %v458
        %v553 = vunpack.c.h.b16 %v458
        %v554 = vunpack.c.l.b16 %v459
        %v555 = vunpack.c.h.b16 %v459
        %v556 = vpack.c.b16 %v526, %v524
        %v557 = vpack.c.b16 %v527, %v525
        %v558 = vpack.c.b16 %v530, %v528
        %v559 = vpack.c.b16 %v531, %v529
        %v560 = vpack.c.b16 %v534, %v532
        %v561 = vpack.c.b16 %v535, %v533
        %v562 = vpack.c.b16 %v538, %v536
        %v563 = vpack.c.b16 %v539, %v537
        %v564 = vpack.c.b16 %v542, %v540
        %v565 = vpack.c.b16 %v543, %v541
        %v566 = vpack.c.b16 %v546, %v544
        %v567 = vpack.c.b16 %v547, %v545
        %v568 = vpack.c.b16 %v550, %v548
        %v569 = vpack.c.b16 %v551, %v549
        %v570 = vpack.c.b16 %v554, %v552
        %v571 = vpack.c.b16 %v555, %v553
        %588 = vmatprep.subr.bf16.mxu0 %v571
        %589 = vmatpush1.bf16.msra.mxu0 %v570
        %590 = vmatprep.subr.bf16.mxu0 %v569
        %591 = vmatpush1.bf16.msra.mxu0 %v568
        %592 = vmatprep.subr.bf16.mxu0 %v567
        %593 = vmatpush1.bf16.msra.mxu0 %v566
        %594 = vmatprep.subr.bf16.mxu0 %v565
        %595 = vmatpush1.bf16.msra.mxu0 %v564
        %596 = vmatprep.subr.bf16.mxu0 %v563
        %597 = vmatpush1.bf16.msra.mxu0 %v562
        %598 = vmatprep.subr.bf16.mxu0 %v561
        %599 = vmatpush1.bf16.msra.mxu0 %v560
        %600 = vmatprep.subr.bf16.mxu0 %v559
        %601 = vmatpush1.bf16.msra.mxu0 %v558
        %602 = vmatprep.subr.bf16.mxu0 %v557
        %603 = vmatpush1.bf16.msra.mxu0 %v556
        %604 = vmatprep.subr.bf16.mxu0 0
        %605 = vmatpush2.bf16.msra.mxu0 0
        %606 = vmatprep.subr.bf16.mxu0 0
        %607 = vmatpush2.bf16.msra.mxu0 0
        %608 = vmatprep.subr.bf16.mxu0 0
        %609 = vmatpush2.bf16.msra.mxu0 0
        %610 = vmatprep.subr.bf16.mxu0 0
        %611 = vmatpush2.bf16.msra.mxu0 0
        %612 = vmatprep.subr.bf16.mxu0 0
        %613 = vmatpush2.bf16.msra.mxu0 0
        %614 = vmatprep.subr.bf16.mxu0 0
        %615 = vmatpush2.bf16.msra.mxu0 0
        %616 = vmatprep.subr.bf16.mxu0 0
        %617 = vmatpush2.bf16.msra.mxu0 0
        %618 = vmatprep.subr.bf16.mxu0 0
        %619 = vmatpush2.bf16.msra.mxu0 0
        %620 = vmatprep.mubr.bf16.mxu0 0
        %621 = vmatmul.mubr.bf16.gmra.mxu0 %v492
        %v622 = vpop.f32.mrf.mxu0
        %v623 = vadd.f32 0.0, %v622
        %v624 = vpop.f32.mrf.mxu0
        %v625 = vadd.f32 0.0, %v624
        %v626 = vpop.f32.mrf.mxu0
        %v627 = vadd.f32 0.0, %v626
        %v628 = vpop.f32.mrf.mxu0
        %v629 = vadd.f32 0.0, %v628
        %630 = vmatprep.mubr.bf16.mxu0 0
        %631 = vmatmul.mubr.bf16.gmra.mxu0 %v493
        %v632 = vpop.f32.mrf.mxu0
        %v633 = vadd.f32 0.0, %v632
        %v634 = vpop.f32.mrf.mxu0
        %v635 = vadd.f32 0.0, %v634
        %v636 = vpop.f32.mrf.mxu0
        %v637 = vadd.f32 0.0, %v636
        %v638 = vpop.f32.mrf.mxu0
        %v639 = vadd.f32 0.0, %v638
        %640 = vmatprep.mubr.bf16.mxu0 0
        %641 = vmatmul.mubr.bf16.gmra.mxu0 %v494
        %v642 = vpop.f32.mrf.mxu0
        %v643 = vadd.f32 0.0, %v642
        %v644 = vpop.f32.mrf.mxu0
        %v645 = vadd.f32 0.0, %v644
        %v646 = vpop.f32.mrf.mxu0
        %v647 = vadd.f32 0.0, %v646
        %v648 = vpop.f32.mrf.mxu0
        %v649 = vadd.f32 0.0, %v648
        %650 = vmatprep.mubr.bf16.mxu0 0
        %651 = vmatmul.mubr.bf16.gmra.mxu0 %v495
        %v652 = vpop.f32.mrf.mxu0
        %v653 = vadd.f32 0.0, %v652
        %v654 = vpop.f32.mrf.mxu0
        %v655 = vadd.f32 0.0, %v654
        %v656 = vpop.f32.mrf.mxu0
        %v657 = vadd.f32 0.0, %v656
        %v658 = vpop.f32.mrf.mxu0
        %v659 = vadd.f32 0.0, %v658
        %660 = vmatprep.mubr.bf16.mxu0 0
        %661 = vmatmul.mubr.bf16.gmra.mxu0 %v496
        %v662 = vpop.f32.mrf.mxu0
        %v663 = vadd.f32 0.0, %v662
        %v664 = vpop.f32.mrf.mxu0
        %v665 = vadd.f32 0.0, %v664
        %v666 = vpop.f32.mrf.mxu0
        %v667 = vadd.f32 0.0, %v666
        %v668 = vpop.f32.mrf.mxu0
        %v669 = vadd.f32 0.0, %v668
        %670 = vmatprep.mubr.bf16.mxu0 0
        %671 = vmatmul.mubr.bf16.gmra.mxu0 %v497
        %v672 = vpop.f32.mrf.mxu0
        %v673 = vadd.f32 0.0, %v672
        %v674 = vpop.f32.mrf.mxu0
        %v675 = vadd.f32 0.0, %v674
        %v676 = vpop.f32.mrf.mxu0
        %v677 = vadd.f32 0.0, %v676
        %v678 = vpop.f32.mrf.mxu0
        %v679 = vadd.f32 0.0, %v678
        %680 = vmatprep.mubr.bf16.mxu0 0
        %681 = vmatmul.mubr.bf16.gmra.mxu0 %v498
        %v682 = vpop.f32.mrf.mxu0
        %v683 = vadd.f32 0.0, %v682
        %v684 = vpop.f32.mrf.mxu0
        %v685 = vadd.f32 0.0, %v684
        %v686 = vpop.f32.mrf.mxu0
        %v687 = vadd.f32 0.0, %v686
        %v688 = vpop.f32.mrf.mxu0
        %v689 = vadd.f32 0.0, %v688
        %690 = vmatprep.mubr.bf16.mxu0 0
        %691 = vmatmul.mubr.bf16.gmra.mxu0 %v499
        %v692 = vpop.f32.mrf.mxu0
        %v693 = vadd.f32 0.0, %v692
        %v694 = vpop.f32.mrf.mxu0
        %v695 = vadd.f32 0.0, %v694
        %v696 = vpop.f32.mrf.mxu0
        %v697 = vadd.f32 0.0, %v696
        %v698 = vpop.f32.mrf.mxu0
        %v699 = vadd.f32 0.0, %v698
        %700 = vdwg.mxu0
        %v701 = vld [vmem:[#allocation2] sm:$0xff]
        %v702 = vld [vmem:[#allocation2 + $0x8] sm:$0xff]
        %v703 = vld [vmem:[#allocation2 + $0x10] sm:$0xff]
        %v704 = vld [vmem:[#allocation2 + $0x18] sm:$0xff]
        %v705 = vld [vmem:[#allocation2 + $0x20] sm:$0xff]
        %v706 = vld [vmem:[#allocation2 + $0x28] sm:$0xff]
        %v707 = vld [vmem:[#allocation2 + $0x30] sm:$0xff]
        %v708 = vld [vmem:[#allocation2 + $0x38] sm:$0xff]
        %v709 = vld [vmem:[#allocation2 + $0x40] sm:$0xff]
        %v710 = vld [vmem:[#allocation2 + $0x48] sm:$0xff]
        %v711 = vld [vmem:[#allocation2 + $0x50] sm:$0xff]
        %v712 = vld [vmem:[#allocation2 + $0x58] sm:$0xff]
        %v713 = vld [vmem:[#allocation2 + $0x60] sm:$0xff]
        %v714 = vld [vmem:[#allocation2 + $0x68] sm:$0xff]
        %v715 = vld [vmem:[#allocation2 + $0x70] sm:$0xff]
        %v716 = vld [vmem:[#allocation2 + $0x78] sm:$0xff]
        %v717 = vmax.f32 %v623, %v625
        %718 = vmax.xlane.f32.xlu0 %v717
        %v719 = vpop.xlane.xlu0 %718
        %v720 = vmax.f32 %v627, %v629
        %721 = vmax.xlane.f32.xlu0 %v720
        %v722 = vpop.xlane.xlu0 %721
        %v723 = vmax.f32 %v633, %v635
        %724 = vmax.xlane.f32.xlu0 %v723
        %v725 = vpop.xlane.xlu0 %724
        %v726 = vmax.f32 %v637, %v639
        %727 = vmax.xlane.f32.xlu0 %v726
        %v728 = vpop.xlane.xlu0 %727
        %v729 = vmax.f32 %v643, %v645
        %730 = vmax.xlane.f32.xlu0 %v729
        %v731 = vpop.xlane.xlu0 %730
        %v732 = vmax.f32 %v647, %v649
        %733 = vmax.xlane.f32.xlu0 %v732
        %v734 = vpop.xlane.xlu0 %733
        %v735 = vmax.f32 %v653, %v655
        %736 = vmax.xlane.f32.xlu0 %v735
        %v737 = vpop.xlane.xlu0 %736
        %v738 = vmax.f32 %v657, %v659
        %739 = vmax.xlane.f32.xlu0 %v738
        %v740 = vpop.xlane.xlu0 %739
        %v741 = vmax.f32 %v663, %v665
        %742 = vmax.xlane.f32.xlu0 %v741
        %v743 = vpop.xlane.xlu0 %742
        %v744 = vmax.f32 %v667, %v669
        %745 = vmax.xlane.f32.xlu0 %v744
        %v746 = vpop.xlane.xlu0 %745
        %v747 = vmax.f32 %v673, %v675
        %748 = vmax.xlane.f32.xlu0 %v747
        %v749 = vpop.xlane.xlu0 %748
        %v750 = vmax.f32 %v677, %v679
        %751 = vmax.xlane.f32.xlu0 %v750
        %v752 = vpop.xlane.xlu0 %751
        %v753 = vmax.f32 %v683, %v685
        %754 = vmax.xlane.f32.xlu0 %v753
        %v755 = vpop.xlane.xlu0 %754
        %v756 = vmax.f32 %v687, %v689
        %757 = vmax.xlane.f32.xlu0 %v756
        %v758 = vpop.xlane.xlu0 %757
        %v759 = vmax.f32 %v693, %v695
        %760 = vmax.xlane.f32.xlu0 %v759
        %v761 = vpop.xlane.xlu0 %760
        %v762 = vmax.f32 %v697, %v699
        %763 = vmax.xlane.f32.xlu0 %v762
        %v764 = vpop.xlane.xlu0 %763
        %v765 = vmax.f32 %v701, %v719
        %v766 = vmax.f32 %v702, %v722
        %v767 = vmax.f32 %v703, %v725
        %v768 = vmax.f32 %v704, %v728
        %v769 = vmax.f32 %v705, %v731
        %v770 = vmax.f32 %v706, %v734
        %v771 = vmax.f32 %v707, %v737
        %v772 = vmax.f32 %v708, %v740
        %v773 = vmax.f32 %v709, %v743
        %v774 = vmax.f32 %v710, %v746
        %v775 = vmax.f32 %v711, %v749
        %v776 = vmax.f32 %v712, %v752
        %v777 = vmax.f32 %v713, %v755
        %v778 = vmax.f32 %v714, %v758
        %v779 = vmax.f32 %v715, %v761
        %v780 = vmax.f32 %v716, %v764
        %v781 = vsub.f32 %v701, %v765
        %v782 = vsub.f32 %v702, %v766
        %v783 = vsub.f32 %v703, %v767
        %v784 = vsub.f32 %v704, %v768
        %v785 = vsub.f32 %v705, %v769
        %v786 = vsub.f32 %v706, %v770
        %v787 = vsub.f32 %v707, %v771
        %v788 = vsub.f32 %v708, %v772
        %v789 = vsub.f32 %v709, %v773
        %v790 = vsub.f32 %v710, %v774
        %v791 = vsub.f32 %v711, %v775
        %v792 = vsub.f32 %v712, %v776
        %v793 = vsub.f32 %v713, %v777
        %v794 = vsub.f32 %v714, %v778
        %v795 = vsub.f32 %v715, %v779
        %v796 = vsub.f32 %v716, %v780
        %v797 = vmul.f32 %v781, 1.442695
        %v798 = vpow.pop %v797
        %v799 = vmul.f32 %v782, 1.442695
        %v800 = vpow.pop %v799
        %v801 = vmul.f32 %v783, 1.442695
        %v802 = vpow.pop %v801
        %v803 = vmul.f32 %v784, 1.442695
        %v804 = vpow.pop %v803
        %v805 = vmul.f32 %v785, 1.442695
        %v806 = vpow.pop %v805
        %v807 = vmul.f32 %v786, 1.442695
        %v808 = vpow.pop %v807
        %v809 = vmul.f32 %v787, 1.442695
        %v810 = vpow.pop %v809
        %v811 = vmul.f32 %v788, 1.442695
        %v812 = vpow.pop %v811
        %v813 = vmul.f32 %v789, 1.442695
        %v814 = vpow.pop %v813
        %v815 = vmul.f32 %v790, 1.442695
        %v816 = vpow.pop %v815
        %v817 = vmul.f32 %v791, 1.442695
        %v818 = vpow.pop %v817
        %v819 = vmul.f32 %v792, 1.442695
        %v820 = vpow.pop %v819
        %v821 = vmul.f32 %v793, 1.442695
        %v822 = vpow.pop %v821
        %v823 = vmul.f32 %v794, 1.442695
        %v824 = vpow.pop %v823
        %v825 = vmul.f32 %v795, 1.442695
        %v826 = vpow.pop %v825
        %v827 = vmul.f32 %v796, 1.442695
        %v828 = vpow.pop %v827
        %v829 = vld [vmem:[#allocation3] sm:$0xff]
        %v830 = vld [vmem:[#allocation3 + $0x8] sm:$0xff]
        %v831 = vld [vmem:[#allocation3 + $0x10] sm:$0xff]
        %v832 = vld [vmem:[#allocation3 + $0x18] sm:$0xff]
        %v833 = vld [vmem:[#allocation3 + $0x20] sm:$0xff]
        %v834 = vld [vmem:[#allocation3 + $0x28] sm:$0xff]
        %v835 = vld [vmem:[#allocation3 + $0x30] sm:$0xff]
        %v836 = vld [vmem:[#allocation3 + $0x38] sm:$0xff]
        %v837 = vld [vmem:[#allocation3 + $0x40] sm:$0xff]
        %v838 = vld [vmem:[#allocation3 + $0x48] sm:$0xff]
        %v839 = vld [vmem:[#allocation3 + $0x50] sm:$0xff]
        %v840 = vld [vmem:[#allocation3 + $0x58] sm:$0xff]
        %v841 = vld [vmem:[#allocation3 + $0x60] sm:$0xff]
        %v842 = vld [vmem:[#allocation3 + $0x68] sm:$0xff]
        %v843 = vld [vmem:[#allocation3 + $0x70] sm:$0xff]
        %v844 = vld [vmem:[#allocation3 + $0x78] sm:$0xff]
        %v845 = vmul.f32 %v798, %v829
        %v846 = vmul.f32 %v800, %v830
        %v847 = vmul.f32 %v802, %v831
        %v848 = vmul.f32 %v804, %v832
        %v849 = vmul.f32 %v806, %v833
        %v850 = vmul.f32 %v808, %v834
        %v851 = vmul.f32 %v810, %v835
        %v852 = vmul.f32 %v812, %v836
        %v853 = vmul.f32 %v814, %v837
        %v854 = vmul.f32 %v816, %v838
        %v855 = vmul.f32 %v818, %v839
        %v856 = vmul.f32 %v820, %v840
        %v857 = vmul.f32 %v822, %v841
        %v858 = vmul.f32 %v824, %v842
        %v859 = vmul.f32 %v826, %v843
        %v860 = vmul.f32 %v828, %v844
        %862 = vset.pattern.permute.xlu0 0
        %863 = vperm.xlu0 %862, %v765
        %v864 = vpop.permute.xlu0 %863
        %867 = vset.pattern.permute.xlu0 0
        %868 = vperm.xlu0 %867, %v766
        %v869 = vpop.permute.xlu0 %868
        %872 = vset.pattern.permute.xlu0 0
        %873 = vperm.xlu0 %872, %v767
        %v874 = vpop.permute.xlu0 %873
        %877 = vset.pattern.permute.xlu0 0
        %878 = vperm.xlu0 %877, %v768
        %v879 = vpop.permute.xlu0 %878
        %882 = vset.pattern.permute.xlu0 0
        %883 = vperm.xlu0 %882, %v769
        %v884 = vpop.permute.xlu0 %883
        %887 = vset.pattern.permute.xlu0 0
        %888 = vperm.xlu0 %887, %v770
        %v889 = vpop.permute.xlu0 %888
        %892 = vset.pattern.permute.xlu0 0
        %893 = vperm.xlu0 %892, %v771
        %v894 = vpop.permute.xlu0 %893
        %897 = vset.pattern.permute.xlu0 0
        %898 = vperm.xlu0 %897, %v772
        %v899 = vpop.permute.xlu0 %898
        %902 = vset.pattern.permute.xlu0 0
        %903 = vperm.xlu0 %902, %v773
        %v904 = vpop.permute.xlu0 %903
        %907 = vset.pattern.permute.xlu0 0
        %908 = vperm.xlu0 %907, %v774
        %v909 = vpop.permute.xlu0 %908
        %912 = vset.pattern.permute.xlu0 0
        %913 = vperm.xlu0 %912, %v775
        %v914 = vpop.permute.xlu0 %913
        %917 = vset.pattern.permute.xlu0 0
        %918 = vperm.xlu0 %917, %v776
        %v919 = vpop.permute.xlu0 %918
        %922 = vset.pattern.permute.xlu0 0
        %923 = vperm.xlu0 %922, %v777
        %v924 = vpop.permute.xlu0 %923
        %927 = vset.pattern.permute.xlu0 0
        %928 = vperm.xlu0 %927, %v778
        %v929 = vpop.permute.xlu0 %928
        %932 = vset.pattern.permute.xlu0 0
        %933 = vperm.xlu0 %932, %v779
        %v934 = vpop.permute.xlu0 %933
        %937 = vset.pattern.permute.xlu0 0
        %938 = vperm.xlu0 %937, %v780
        %v939 = vpop.permute.xlu0 %938
        %v941 = vsub.f32 %v623, %v864
        %v942 = vsub.f32 %v625, %v864
        %v943 = vsub.f32 %v627, %v869
        %v944 = vsub.f32 %v629, %v869
        %v945 = vsub.f32 %v633, %v874
        %v946 = vsub.f32 %v635, %v874
        %v947 = vsub.f32 %v637, %v879
        %v948 = vsub.f32 %v639, %v879
        %v949 = vsub.f32 %v643, %v884
        %v950 = vsub.f32 %v645, %v884
        %v951 = vsub.f32 %v647, %v889
        %v952 = vsub.f32 %v649, %v889
        %v953 = vsub.f32 %v653, %v894
        %v954 = vsub.f32 %v655, %v894
        %v955 = vsub.f32 %v657, %v899
        %v956 = vsub.f32 %v659, %v899
        %v957 = vsub.f32 %v663, %v904
        %v958 = vsub.f32 %v665, %v904
        %v959 = vsub.f32 %v667, %v909
        %v960 = vsub.f32 %v669, %v909
        %v961 = vsub.f32 %v673, %v914
        %v962 = vsub.f32 %v675, %v914
        %v963 = vsub.f32 %v677, %v919
        %v964 = vsub.f32 %v679, %v919
        %v965 = vsub.f32 %v683, %v924
        %v966 = vsub.f32 %v685, %v924
        %v967 = vsub.f32 %v687, %v929
        %v968 = vsub.f32 %v689, %v929
        %v969 = vsub.f32 %v693, %v934
        %v970 = vsub.f32 %v695, %v934
        %v971 = vsub.f32 %v697, %v939
        %v972 = vsub.f32 %v699, %v939
        %v973 = vmul.f32 %v941, 1.442695
        %v974 = vpow.pop %v973
        %v975 = vmul.f32 %v942, 1.442695
        %v976 = vpow.pop %v975
        %v977 = vmul.f32 %v943, 1.442695
        %v978 = vpow.pop %v977
        %v979 = vmul.f32 %v944, 1.442695
        %v980 = vpow.pop %v979
        %v981 = vmul.f32 %v945, 1.442695
        %v982 = vpow.pop %v981
        %v983 = vmul.f32 %v946, 1.442695
        %v984 = vpow.pop %v983
        %v985 = vmul.f32 %v947, 1.442695
        %v986 = vpow.pop %v985
        %v987 = vmul.f32 %v948, 1.442695
        %v988 = vpow.pop %v987
        %v989 = vmul.f32 %v949, 1.442695
        %v990 = vpow.pop %v989
        %v991 = vmul.f32 %v950, 1.442695
        %v992 = vpow.pop %v991
        %v993 = vmul.f32 %v951, 1.442695
        %v994 = vpow.pop %v993
        %v995 = vmul.f32 %v952, 1.442695
        %v996 = vpow.pop %v995
        %v997 = vmul.f32 %v953, 1.442695
        %v998 = vpow.pop %v997
        %v999 = vmul.f32 %v954, 1.442695
        %v1000 = vpow.pop %v999
        %v1001 = vmul.f32 %v955, 1.442695
        %v1002 = vpow.pop %v1001
        %v1003 = vmul.f32 %v956, 1.442695
        %v1004 = vpow.pop %v1003
        %v1005 = vmul.f32 %v957, 1.442695
        %v1006 = vpow.pop %v1005
        %v1007 = vmul.f32 %v958, 1.442695
        %v1008 = vpow.pop %v1007
        %v1009 = vmul.f32 %v959, 1.442695
        %v1010 = vpow.pop %v1009
        %v1011 = vmul.f32 %v960, 1.442695
        %v1012 = vpow.pop %v1011
        %v1013 = vmul.f32 %v961, 1.442695
        %v1014 = vpow.pop %v1013
        %v1015 = vmul.f32 %v962, 1.442695
        %v1016 = vpow.pop %v1015
        %v1017 = vmul.f32 %v963, 1.442695
        %v1018 = vpow.pop %v1017
        %v1019 = vmul.f32 %v964, 1.442695
        %v1020 = vpow.pop %v1019
        %v1021 = vmul.f32 %v965, 1.442695
        %v1022 = vpow.pop %v1021
        %v1023 = vmul.f32 %v966, 1.442695
        %v1024 = vpow.pop %v1023
        %v1025 = vmul.f32 %v967, 1.442695
        %v1026 = vpow.pop %v1025
        %v1027 = vmul.f32 %v968, 1.442695
        %v1028 = vpow.pop %v1027
        %v1029 = vmul.f32 %v969, 1.442695
        %v1030 = vpow.pop %v1029
        %v1031 = vmul.f32 %v970, 1.442695
        %v1032 = vpow.pop %v1031
        %v1033 = vmul.f32 %v971, 1.442695
        %v1034 = vpow.pop %v1033
        %v1035 = vmul.f32 %v972, 1.442695
        %v1036 = vpow.pop %v1035
        %v1037 = vadd.f32 %v974, %v976
        %1038 = vadd.xlane.f32.xlu0 %v1037
        %v1039 = vpop.xlane.xlu0 %1038
        %v1040 = vadd.f32 %v978, %v980
        %1041 = vadd.xlane.f32.xlu0 %v1040
        %v1042 = vpop.xlane.xlu0 %1041
        %v1043 = vadd.f32 %v982, %v984
        %1044 = vadd.xlane.f32.xlu0 %v1043
        %v1045 = vpop.xlane.xlu0 %1044
        %v1046 = vadd.f32 %v986, %v988
        %1047 = vadd.xlane.f32.xlu0 %v1046
        %v1048 = vpop.xlane.xlu0 %1047
        %v1049 = vadd.f32 %v990, %v992
        %1050 = vadd.xlane.f32.xlu0 %v1049
        %v1051 = vpop.xlane.xlu0 %1050
        %v1052 = vadd.f32 %v994, %v996
        %1053 = vadd.xlane.f32.xlu0 %v1052
        %v1054 = vpop.xlane.xlu0 %1053
        %v1055 = vadd.f32 %v998, %v1000
        %1056 = vadd.xlane.f32.xlu0 %v1055
        %v1057 = vpop.xlane.xlu0 %1056
        %v1058 = vadd.f32 %v1002, %v1004
        %1059 = vadd.xlane.f32.xlu0 %v1058
        %v1060 = vpop.xlane.xlu0 %1059
        %v1061 = vadd.f32 %v1006, %v1008
        %1062 = vadd.xlane.f32.xlu0 %v1061
        %v1063 = vpop.xlane.xlu0 %1062
        %v1064 = vadd.f32 %v1010, %v1012
        %1065 = vadd.xlane.f32.xlu0 %v1064
        %v1066 = vpop.xlane.xlu0 %1065
        %v1067 = vadd.f32 %v1014, %v1016
        %1068 = vadd.xlane.f32.xlu0 %v1067
        %v1069 = vpop.xlane.xlu0 %1068
        %v1070 = vadd.f32 %v1018, %v1020
        %1071 = vadd.xlane.f32.xlu0 %v1070
        %v1072 = vpop.xlane.xlu0 %1071
        %v1073 = vadd.f32 %v1022, %v1024
        %1074 = vadd.xlane.f32.xlu0 %v1073
        %v1075 = vpop.xlane.xlu0 %1074
        %v1076 = vadd.f32 %v1026, %v1028
        %1077 = vadd.xlane.f32.xlu0 %v1076
        %v1078 = vpop.xlane.xlu0 %1077
        %v1079 = vadd.f32 %v1030, %v1032
        %1080 = vadd.xlane.f32.xlu0 %v1079
        %v1081 = vpop.xlane.xlu0 %1080
        %v1082 = vadd.f32 %v1034, %v1036
        %1083 = vadd.xlane.f32.xlu0 %v1082
        %v1084 = vpop.xlane.xlu0 %1083
        %v1085 = vadd.f32 %v845, %v1039
        %v1086 = vadd.f32 %v846, %v1042
        %v1087 = vadd.f32 %v847, %v1045
        %v1088 = vadd.f32 %v848, %v1048
        %v1089 = vadd.f32 %v849, %v1051
        %v1090 = vadd.f32 %v850, %v1054
        %v1091 = vadd.f32 %v851, %v1057
        %v1092 = vadd.f32 %v852, %v1060
        %v1093 = vadd.f32 %v853, %v1063
        %v1094 = vadd.f32 %v854, %v1066
        %v1095 = vadd.f32 %v855, %v1069
        %v1096 = vadd.f32 %v856, %v1072
        %v1097 = vadd.f32 %v857, %v1075
        %v1098 = vadd.f32 %v858, %v1078
        %v1099 = vadd.f32 %v859, %v1081
        %v1100 = vadd.f32 %v860, %v1084
        %vm1101 = vcmask 7168
        %1102 = vst.msk [vmem:[#allocation3] sm:$0xff] %vm1101, %v1085
        %1103 = vst.msk [vmem:[#allocation3 + $0x8] sm:$0xff] %vm1101, %v1086
        %1104 = vst.msk [vmem:[#allocation3 + $0x10] sm:$0xff] %vm1101, %v1087
        %1105 = vst.msk [vmem:[#allocation3 + $0x18] sm:$0xff] %vm1101, %v1088
        %1106 = vst.msk [vmem:[#allocation3 + $0x20] sm:$0xff] %vm1101, %v1089
        %1107 = vst.msk [vmem:[#allocation3 + $0x28] sm:$0xff] %vm1101, %v1090
        %1108 = vst.msk [vmem:[#allocation3 + $0x30] sm:$0xff] %vm1101, %v1091
        %1109 = vst.msk [vmem:[#allocation3 + $0x38] sm:$0xff] %vm1101, %v1092
        %1110 = vst.msk [vmem:[#allocation3 + $0x40] sm:$0xff] %vm1101, %v1093
        %1111 = vst.msk [vmem:[#allocation3 + $0x48] sm:$0xff] %vm1101, %v1094
        %1112 = vst.msk [vmem:[#allocation3 + $0x50] sm:$0xff] %vm1101, %v1095
        %1113 = vst.msk [vmem:[#allocation3 + $0x58] sm:$0xff] %vm1101, %v1096
        %1114 = vst.msk [vmem:[#allocation3 + $0x60] sm:$0xff] %vm1101, %v1097
        %1115 = vst.msk [vmem:[#allocation3 + $0x68] sm:$0xff] %vm1101, %v1098
        %1116 = vst.msk [vmem:[#allocation3 + $0x70] sm:$0xff] %vm1101, %v1099
        %1117 = vst.msk [vmem:[#allocation3 + $0x78] sm:$0xff] %vm1101, %v1100
        %1118 = vst.msk [vmem:[#allocation2] sm:$0xff] %vm1101, %v765
        %1119 = vst.msk [vmem:[#allocation2 + $0x8] sm:$0xff] %vm1101, %v766
        %1120 = vst.msk [vmem:[#allocation2 + $0x10] sm:$0xff] %vm1101, %v767
        %1121 = vst.msk [vmem:[#allocation2 + $0x18] sm:$0xff] %vm1101, %v768
        %1122 = vst.msk [vmem:[#allocation2 + $0x20] sm:$0xff] %vm1101, %v769
        %1123 = vst.msk [vmem:[#allocation2 + $0x28] sm:$0xff] %vm1101, %v770
        %1124 = vst.msk [vmem:[#allocation2 + $0x30] sm:$0xff] %vm1101, %v771
        %1125 = vst.msk [vmem:[#allocation2 + $0x38] sm:$0xff] %vm1101, %v772
        %1126 = vst.msk [vmem:[#allocation2 + $0x40] sm:$0xff] %vm1101, %v773
        %1127 = vst.msk [vmem:[#allocation2 + $0x48] sm:$0xff] %vm1101, %v774
        %1128 = vst.msk [vmem:[#allocation2 + $0x50] sm:$0xff] %vm1101, %v775
        %1129 = vst.msk [vmem:[#allocation2 + $0x58] sm:$0xff] %vm1101, %v776
        %1130 = vst.msk [vmem:[#allocation2 + $0x60] sm:$0xff] %vm1101, %v777
        %1131 = vst.msk [vmem:[#allocation2 + $0x68] sm:$0xff] %vm1101, %v778
        %1132 = vst.msk [vmem:[#allocation2 + $0x70] sm:$0xff] %vm1101, %v779
        %1133 = vst.msk [vmem:[#allocation2 + $0x78] sm:$0xff] %vm1101, %v780
        %v1134 = vlaneseq
        %v1135 = vand.u32 %v1134, 127
        %v1136 = vadd.s32 %v1135, 128
        %v1137 = vld [vmem:[%s360] sm:$0xff]
        %v1138 = vld [vmem:[%s360 + $0x8] sm:$0xff]
        %v1139 = vld [vmem:[%s360 + $0x10] sm:$0xff]
        %v1140 = vld [vmem:[%s360 + $0x18] sm:$0xff]
        %v1141 = vld [vmem:[%s360 + $0x20] sm:$0xff]
        %v1142 = vld [vmem:[%s360 + $0x28] sm:$0xff]
        %v1143 = vld [vmem:[%s360 + $0x30] sm:$0xff]
        %v1144 = vld [vmem:[%s360 + $0x38] sm:$0xff]
        %v1145 = vld [vmem:[%s360 + $0x40] sm:$0xff]
        %v1146 = vld [vmem:[%s360 + $0x48] sm:$0xff]
        %v1147 = vld [vmem:[%s360 + $0x50] sm:$0xff]
        %v1148 = vld [vmem:[%s360 + $0x58] sm:$0xff]
        %v1149 = vld [vmem:[%s360 + $0x60] sm:$0xff]
        %v1150 = vld [vmem:[%s360 + $0x68] sm:$0xff]
        %v1151 = vld [vmem:[%s360 + $0x70] sm:$0xff]
        %v1152 = vld [vmem:[%s360 + $0x78] sm:$0xff]
        %s1153 = smul.u32 %s20, 256
        %v1154 = vstv %s1153
        %v1155 = vsub.s32 %v1137, %v1154
        %v1156 = vsub.s32 %v1138, %v1154
        %v1157 = vsub.s32 %v1139, %v1154
        %v1158 = vsub.s32 %v1140, %v1154
        %v1159 = vsub.s32 %v1141, %v1154
        %v1160 = vsub.s32 %v1142, %v1154
        %v1161 = vsub.s32 %v1143, %v1154
        %v1162 = vsub.s32 %v1144, %v1154
        %v1163 = vsub.s32 %v1145, %v1154
        %v1164 = vsub.s32 %v1146, %v1154
        %v1165 = vsub.s32 %v1147, %v1154
        %v1166 = vsub.s32 %v1148, %v1154
        %v1167 = vsub.s32 %v1149, %v1154
        %v1168 = vsub.s32 %v1150, %v1154
        %v1169 = vsub.s32 %v1151, %v1154
        %v1170 = vsub.s32 %v1152, %v1154
        %v1171 = vld [vmem:[#allocation4] sm:$0xff]
        %v1172 = vld [vmem:[#allocation4 + $0x8] sm:$0xff]
        %v1173 = vld [vmem:[#allocation4 + $0x10] sm:$0xff]
        %v1174 = vld [vmem:[#allocation4 + $0x18] sm:$0xff]
        %v1175 = vld [vmem:[#allocation4 + $0x20] sm:$0xff]
        %v1176 = vld [vmem:[#allocation4 + $0x28] sm:$0xff]
        %v1177 = vld [vmem:[#allocation4 + $0x30] sm:$0xff]
        %v1178 = vld [vmem:[#allocation4 + $0x38] sm:$0xff]
        %v1179 = vld [vmem:[#allocation4 + $0x40] sm:$0xff]
        %v1180 = vld [vmem:[#allocation4 + $0x48] sm:$0xff]
        %v1181 = vld [vmem:[#allocation4 + $0x50] sm:$0xff]
        %v1182 = vld [vmem:[#allocation4 + $0x58] sm:$0xff]
        %v1183 = vld [vmem:[#allocation4 + $0x60] sm:$0xff]
        %v1184 = vld [vmem:[#allocation4 + $0x68] sm:$0xff]
        %v1185 = vld [vmem:[#allocation4 + $0x70] sm:$0xff]
        %v1186 = vld [vmem:[#allocation4 + $0x78] sm:$0xff]
        %1187 = vset.pattern.permute.xlu0 0
        %1188 = vperm.xlu0 %1187, %v1155
        %v1189 = vpop.permute.xlu0 %1188
        %1190 = vset.pattern.permute.xlu0 0
        %1191 = vperm.xlu0 %1190, %v1156
        %v1192 = vpop.permute.xlu0 %1191
        %1193 = vset.pattern.permute.xlu0 0
        %1194 = vperm.xlu0 %1193, %v1157
        %v1195 = vpop.permute.xlu0 %1194
        %1196 = vset.pattern.permute.xlu0 0
        %1197 = vperm.xlu0 %1196, %v1158
        %v1198 = vpop.permute.xlu0 %1197
        %1199 = vset.pattern.permute.xlu0 0
        %1200 = vperm.xlu0 %1199, %v1159
        %v1201 = vpop.permute.xlu0 %1200
        %1202 = vset.pattern.permute.xlu0 0
        %1203 = vperm.xlu0 %1202, %v1160
        %v1204 = vpop.permute.xlu0 %1203
        %1205 = vset.pattern.permute.xlu0 0
        %1206 = vperm.xlu0 %1205, %v1161
        %v1207 = vpop.permute.xlu0 %1206
        %1208 = vset.pattern.permute.xlu0 0
        %1209 = vperm.xlu0 %1208, %v1162
        %v1210 = vpop.permute.xlu0 %1209
        %1211 = vset.pattern.permute.xlu0 0
        %1212 = vperm.xlu0 %1211, %v1163
        %v1213 = vpop.permute.xlu0 %1212
        %1214 = vset.pattern.permute.xlu0 0
        %1215 = vperm.xlu0 %1214, %v1164
        %v1216 = vpop.permute.xlu0 %1215
        %1217 = vset.pattern.permute.xlu0 0
        %1218 = vperm.xlu0 %1217, %v1165
        %v1219 = vpop.permute.xlu0 %1218
        %1220 = vset.pattern.permute.xlu0 0
        %1221 = vperm.xlu0 %1220, %v1166
        %v1222 = vpop.permute.xlu0 %1221
        %1223 = vset.pattern.permute.xlu0 0
        %1224 = vperm.xlu0 %1223, %v1167
        %v1225 = vpop.permute.xlu0 %1224
        %1226 = vset.pattern.permute.xlu0 0
        %1227 = vperm.xlu0 %1226, %v1168
        %v1228 = vpop.permute.xlu0 %1227
        %1229 = vset.pattern.permute.xlu0 0
        %1230 = vperm.xlu0 %1229, %v1169
        %v1231 = vpop.permute.xlu0 %1230
        %1232 = vset.pattern.permute.xlu0 0
        %1233 = vperm.xlu0 %1232, %v1170
        %v1234 = vpop.permute.xlu0 %1233
        %vm1235 = vcmp.eq.s32.totalorder %v1135, %v1189
        %vm1236 = vcmp.eq.s32.totalorder %v1136, %v1189
        %vm1237 = vcmp.eq.s32.totalorder %v1135, %v1192
        %vm1238 = vcmp.eq.s32.totalorder %v1136, %v1192
        %vm1239 = vcmp.eq.s32.totalorder %v1135, %v1195
        %vm1240 = vcmp.eq.s32.totalorder %v1136, %v1195
        %vm1241 = vcmp.eq.s32.totalorder %v1135, %v1198
        %vm1242 = vcmp.eq.s32.totalorder %v1136, %v1198
        %vm1243 = vcmp.eq.s32.totalorder %v1135, %v1201
        %vm1244 = vcmp.eq.s32.totalorder %v1136, %v1201
        %vm1245 = vcmp.eq.s32.totalorder %v1135, %v1204
        %vm1246 = vcmp.eq.s32.totalorder %v1136, %v1204
        %vm1247 = vcmp.eq.s32.totalorder %v1135, %v1207
        %vm1248 = vcmp.eq.s32.totalorder %v1136, %v1207
        %vm1249 = vcmp.eq.s32.totalorder %v1135, %v1210
        %vm1250 = vcmp.eq.s32.totalorder %v1136, %v1210
        %vm1251 = vcmp.eq.s32.totalorder %v1135, %v1213
        %vm1252 = vcmp.eq.s32.totalorder %v1136, %v1213
        %vm1253 = vcmp.eq.s32.totalorder %v1135, %v1216
        %vm1254 = vcmp.eq.s32.totalorder %v1136, %v1216
        %vm1255 = vcmp.eq.s32.totalorder %v1135, %v1219
        %vm1256 = vcmp.eq.s32.totalorder %v1136, %v1219
        %vm1257 = vcmp.eq.s32.totalorder %v1135, %v1222
        %vm1258 = vcmp.eq.s32.totalorder %v1136, %v1222
        %vm1259 = vcmp.eq.s32.totalorder %v1135, %v1225
        %vm1260 = vcmp.eq.s32.totalorder %v1136, %v1225
        %vm1261 = vcmp.eq.s32.totalorder %v1135, %v1228
        %vm1262 = vcmp.eq.s32.totalorder %v1136, %v1228
        %vm1263 = vcmp.eq.s32.totalorder %v1135, %v1231
        %vm1264 = vcmp.eq.s32.totalorder %v1136, %v1231
        %vm1265 = vcmp.eq.s32.totalorder %v1135, %v1234
        %vm1266 = vcmp.eq.s32.totalorder %v1136, %v1234
        %v1267 = vsel %vm1235, %v623, 0.0
        %v1268 = vsel %vm1236, %v625, 0.0
        %v1269 = vsel %vm1237, %v627, 0.0
        %v1270 = vsel %vm1238, %v629, 0.0
        %v1271 = vsel %vm1239, %v633, 0.0
        %v1272 = vsel %vm1240, %v635, 0.0
        %v1273 = vsel %vm1241, %v637, 0.0
        %v1274 = vsel %vm1242, %v639, 0.0
        %v1275 = vsel %vm1243, %v643, 0.0
        %v1276 = vsel %vm1244, %v645, 0.0
        %v1277 = vsel %vm1245, %v647, 0.0
        %v1278 = vsel %vm1246, %v649, 0.0
        %v1279 = vsel %vm1247, %v653, 0.0
        %v1280 = vsel %vm1248, %v655, 0.0
        %v1281 = vsel %vm1249, %v657, 0.0
        %v1282 = vsel %vm1250, %v659, 0.0
        %v1283 = vsel %vm1251, %v663, 0.0
        %v1284 = vsel %vm1252, %v665, 0.0
        %v1285 = vsel %vm1253, %v667, 0.0
        %v1286 = vsel %vm1254, %v669, 0.0
        %v1287 = vsel %vm1255, %v673, 0.0
        %v1288 = vsel %vm1256, %v675, 0.0
        %v1289 = vsel %vm1257, %v677, 0.0
        %v1290 = vsel %vm1258, %v679, 0.0
        %v1291 = vsel %vm1259, %v683, 0.0
        %v1292 = vsel %vm1260, %v685, 0.0
        %v1293 = vsel %vm1261, %v687, 0.0
        %v1294 = vsel %vm1262, %v689, 0.0
        %v1295 = vsel %vm1263, %v693, 0.0
        %v1296 = vsel %vm1264, %v695, 0.0
        %v1297 = vsel %vm1265, %v697, 0.0
        %v1298 = vsel %vm1266, %v699, 0.0
        %v1299 = vadd.f32 %v1267, %v1268
        %1300 = vadd.xlane.f32.xlu0 %v1299
        %v1301 = vpop.xlane.xlu0 %1300
        %v1302 = vadd.f32 %v1269, %v1270
        %1303 = vadd.xlane.f32.xlu0 %v1302
        %v1304 = vpop.xlane.xlu0 %1303
        %v1305 = vadd.f32 %v1271, %v1272
        %1306 = vadd.xlane.f32.xlu0 %v1305
        %v1307 = vpop.xlane.xlu0 %1306
        %v1308 = vadd.f32 %v1273, %v1274
        %1309 = vadd.xlane.f32.xlu0 %v1308
        %v1310 = vpop.xlane.xlu0 %1309
        %v1311 = vadd.f32 %v1275, %v1276
        %1312 = vadd.xlane.f32.xlu0 %v1311
        %v1313 = vpop.xlane.xlu0 %1312
        %v1314 = vadd.f32 %v1277, %v1278
        %1315 = vadd.xlane.f32.xlu0 %v1314
        %v1316 = vpop.xlane.xlu0 %1315
        %v1317 = vadd.f32 %v1279, %v1280
        %1318 = vadd.xlane.f32.xlu0 %v1317
        %v1319 = vpop.xlane.xlu0 %1318
        %v1320 = vadd.f32 %v1281, %v1282
        %1321 = vadd.xlane.f32.xlu0 %v1320
        %v1322 = vpop.xlane.xlu0 %1321
        %v1323 = vadd.f32 %v1283, %v1284
        %1324 = vadd.xlane.f32.xlu0 %v1323
        %v1325 = vpop.xlane.xlu0 %1324
        %v1326 = vadd.f32 %v1285, %v1286
        %1327 = vadd.xlane.f32.xlu0 %v1326
        %v1328 = vpop.xlane.xlu0 %1327
        %v1329 = vadd.f32 %v1287, %v1288
        %1330 = vadd.xlane.f32.xlu0 %v1329
        %v1331 = vpop.xlane.xlu0 %1330
        %v1332 = vadd.f32 %v1289, %v1290
        %1333 = vadd.xlane.f32.xlu0 %v1332
        %v1334 = vpop.xlane.xlu0 %1333
        %v1335 = vadd.f32 %v1291, %v1292
        %1336 = vadd.xlane.f32.xlu0 %v1335
        %v1337 = vpop.xlane.xlu0 %1336
        %v1338 = vadd.f32 %v1293, %v1294
        %1339 = vadd.xlane.f32.xlu0 %v1338
        %v1340 = vpop.xlane.xlu0 %1339
        %v1341 = vadd.f32 %v1295, %v1296
        %1342 = vadd.xlane.f32.xlu0 %v1341
        %v1343 = vpop.xlane.xlu0 %1342
        %v1344 = vadd.f32 %v1297, %v1298
        %1345 = vadd.xlane.f32.xlu0 %v1344
        %v1346 = vpop.xlane.xlu0 %1345
        %v1347 = vadd.f32 %v1171, %v1301
        %v1348 = vadd.f32 %v1172, %v1304
        %v1349 = vadd.f32 %v1173, %v1307
        %v1350 = vadd.f32 %v1174, %v1310
        %v1351 = vadd.f32 %v1175, %v1313
        %v1352 = vadd.f32 %v1176, %v1316
        %v1353 = vadd.f32 %v1177, %v1319
        %v1354 = vadd.f32 %v1178, %v1322
        %v1355 = vadd.f32 %v1179, %v1325
        %v1356 = vadd.f32 %v1180, %v1328
        %v1357 = vadd.f32 %v1181, %v1331
        %v1358 = vadd.f32 %v1182, %v1334
        %v1359 = vadd.f32 %v1183, %v1337
        %v1360 = vadd.f32 %v1184, %v1340
        %v1361 = vadd.f32 %v1185, %v1343
        %v1362 = vadd.f32 %v1186, %v1346
        %1363 = vst.msk [vmem:[#allocation4] sm:$0xff] %vm1101, %v1347
        %1364 = vst.msk [vmem:[#allocation4 + $0x8] sm:$0xff] %vm1101, %v1348
        %1365 = vst.msk [vmem:[#allocation4 + $0x10] sm:$0xff] %vm1101, %v1349
        %1366 = vst.msk [vmem:[#allocation4 + $0x18] sm:$0xff] %vm1101, %v1350
        %1367 = vst.msk [vmem:[#allocation4 + $0x20] sm:$0xff] %vm1101, %v1351
        %1368 = vst.msk [vmem:[#allocation4 + $0x28] sm:$0xff] %vm1101, %v1352
        %1369 = vst.msk [vmem:[#allocation4 + $0x30] sm:$0xff] %vm1101, %v1353
        %1370 = vst.msk [vmem:[#allocation4 + $0x38] sm:$0xff] %vm1101, %v1354
        %1371 = vst.msk [vmem:[#allocation4 + $0x40] sm:$0xff] %vm1101, %v1355
        %1372 = vst.msk [vmem:[#allocation4 + $0x48] sm:$0xff] %vm1101, %v1356
        %1373 = vst.msk [vmem:[#allocation4 + $0x50] sm:$0xff] %vm1101, %v1357
        %1374 = vst.msk [vmem:[#allocation4 + $0x58] sm:$0xff] %vm1101, %v1358
        %1375 = vst.msk [vmem:[#allocation4 + $0x60] sm:$0xff] %vm1101, %v1359
        %1376 = vst.msk [vmem:[#allocation4 + $0x68] sm:$0xff] %vm1101, %v1360
        %1377 = vst.msk [vmem:[#allocation4 + $0x70] sm:$0xff] %vm1101, %v1361
        %1378 = vst.msk [vmem:[#allocation4 + $0x78] sm:$0xff] %vm1101, %v1362
        %p1379 = scmp.eq.s32.totalorder %s20, 1
        // Predicated region
        $region79: #{loss_wrapper_forward.1} parent=69 // pred_check
          %p1380 = pneg %p1379
        $region80: #{loss_wrapper_forward.1} parent=69 // pred_check_branch
          %1382 = sbr.rel (%p1380) target = $region82
        $region81: #{loss_wrapper_forward.1} parent=69 // pred_region
          %v1383 = vld [vmem:[#allocation3] sm:$0xff]
          %v1384 = vld [vmem:[#allocation3 + $0x8] sm:$0xff]
          %v1385 = vld [vmem:[#allocation3 + $0x10] sm:$0xff]
          %v1386 = vld [vmem:[#allocation3 + $0x18] sm:$0xff]
          %v1387 = vld [vmem:[#allocation3 + $0x20] sm:$0xff]
          %v1388 = vld [vmem:[#allocation3 + $0x28] sm:$0xff]
          %v1389 = vld [vmem:[#allocation3 + $0x30] sm:$0xff]
          %v1390 = vld [vmem:[#allocation3 + $0x38] sm:$0xff]
          %v1391 = vld [vmem:[#allocation3 + $0x40] sm:$0xff]
          %v1392 = vld [vmem:[#allocation3 + $0x48] sm:$0xff]
          %v1393 = vld [vmem:[#allocation3 + $0x50] sm:$0xff]
          %v1394 = vld [vmem:[#allocation3 + $0x58] sm:$0xff]
          %v1395 = vld [vmem:[#allocation3 + $0x60] sm:$0xff]
          %v1396 = vld [vmem:[#allocation3 + $0x68] sm:$0xff]
          %v1397 = vld [vmem:[#allocation3 + $0x70] sm:$0xff]
          %v1398 = vld [vmem:[#allocation3 + $0x78] sm:$0xff]
          %v1399 = vld [vmem:[#allocation2] sm:$0xff]
          %v1400 = vld [vmem:[#allocation2 + $0x8] sm:$0xff]
          %v1401 = vld [vmem:[#allocation2 + $0x10] sm:$0xff]
          %v1402 = vld [vmem:[#allocation2 + $0x18] sm:$0xff]
          %v1403 = vld [vmem:[#allocation2 + $0x20] sm:$0xff]
          %v1404 = vld [vmem:[#allocation2 + $0x28] sm:$0xff]
          %v1405 = vld [vmem:[#allocation2 + $0x30] sm:$0xff]
          %v1406 = vld [vmem:[#allocation2 + $0x38] sm:$0xff]
          %v1407 = vld [vmem:[#allocation2 + $0x40] sm:$0xff]
          %v1408 = vld [vmem:[#allocation2 + $0x48] sm:$0xff]
          %v1409 = vld [vmem:[#allocation2 + $0x50] sm:$0xff]
          %v1410 = vld [vmem:[#allocation2 + $0x58] sm:$0xff]
          %v1411 = vld [vmem:[#allocation2 + $0x60] sm:$0xff]
          %v1412 = vld [vmem:[#allocation2 + $0x68] sm:$0xff]
          %v1413 = vld [vmem:[#allocation2 + $0x70] sm:$0xff]
          %v1414 = vld [vmem:[#allocation2 + $0x78] sm:$0xff]
          %v1415 = vsub.f32 0.0, %v1399
          %v1416 = vsub.f32 0.0, %v1400
          %v1417 = vsub.f32 0.0, %v1401
          %v1418 = vsub.f32 0.0, %v1402
          %v1419 = vsub.f32 0.0, %v1403
          %v1420 = vsub.f32 0.0, %v1404
          %v1421 = vsub.f32 0.0, %v1405
          %v1422 = vsub.f32 0.0, %v1406
          %v1423 = vsub.f32 0.0, %v1407
          %v1424 = vsub.f32 0.0, %v1408
          %v1425 = vsub.f32 0.0, %v1409
          %v1426 = vsub.f32 0.0, %v1410
          %v1427 = vsub.f32 0.0, %v1411
          %v1428 = vsub.f32 0.0, %v1412
          %v1429 = vsub.f32 0.0, %v1413
          %v1430 = vsub.f32 0.0, %v1414
          %v1431 = vmul.f32 %v1415, 1.442695
          %v1432 = vpow.pop %v1431
          %v1433 = vmul.f32 %v1416, 1.442695
          %v1434 = vpow.pop %v1433
          %v1435 = vmul.f32 %v1417, 1.442695
          %v1436 = vpow.pop %v1435
          %v1437 = vmul.f32 %v1418, 1.442695
          %v1438 = vpow.pop %v1437
          %v1439 = vmul.f32 %v1419, 1.442695
          %v1440 = vpow.pop %v1439
          %v1441 = vmul.f32 %v1420, 1.442695
          %v1442 = vpow.pop %v1441
          %v1443 = vmul.f32 %v1421, 1.442695
          %v1444 = vpow.pop %v1443
          %v1445 = vmul.f32 %v1422, 1.442695
          %v1446 = vpow.pop %v1445
          %v1447 = vmul.f32 %v1423, 1.442695
          %v1448 = vpow.pop %v1447
          %v1449 = vmul.f32 %v1424, 1.442695
          %v1450 = vpow.pop %v1449
          %v1451 = vmul.f32 %v1425, 1.442695
          %v1452 = vpow.pop %v1451
          %v1453 = vmul.f32 %v1426, 1.442695
          %v1454 = vpow.pop %v1453
          %v1455 = vmul.f32 %v1427, 1.442695
          %v1456 = vpow.pop %v1455
          %v1457 = vmul.f32 %v1428, 1.442695
          %v1458 = vpow.pop %v1457
          %v1459 = vmul.f32 %v1429, 1.442695
          %v1460 = vpow.pop %v1459
          %v1461 = vmul.f32 %v1430, 1.442695
          %v1462 = vpow.pop %v1461
          %v1463 = vmul.f32 %v1432, 12.0
          %v1464 = vmul.f32 %v1434, 12.0
          %v1465 = vmul.f32 %v1436, 12.0
          %v1466 = vmul.f32 %v1438, 12.0
          %v1467 = vmul.f32 %v1440, 12.0
          %v1468 = vmul.f32 %v1442, 12.0
          %v1469 = vmul.f32 %v1444, 12.0
          %v1470 = vmul.f32 %v1446, 12.0
          %v1471 = vmul.f32 %v1448, 12.0
          %v1472 = vmul.f32 %v1450, 12.0
          %v1473 = vmul.f32 %v1452, 12.0
          %v1474 = vmul.f32 %v1454, 12.0
          %v1475 = vmul.f32 %v1456, 12.0
          %v1476 = vmul.f32 %v1458, 12.0
          %v1477 = vmul.f32 %v1460, 12.0
          %v1478 = vmul.f32 %v1462, 12.0
          %v1479 = vsub.f32 %v1383, %v1463
          %v1480 = vsub.f32 %v1384, %v1464
          %v1481 = vsub.f32 %v1385, %v1465
          %v1482 = vsub.f32 %v1386, %v1466
          %v1483 = vsub.f32 %v1387, %v1467
          %v1484 = vsub.f32 %v1388, %v1468
          %v1485 = vsub.f32 %v1389, %v1469
          %v1486 = vsub.f32 %v1390, %v1470
          %v1487 = vsub.f32 %v1391, %v1471
          %v1488 = vsub.f32 %v1392, %v1472
          %v1489 = vsub.f32 %v1393, %v1473
          %v1490 = vsub.f32 %v1394, %v1474
          %v1491 = vsub.f32 %v1395, %v1475
          %v1492 = vsub.f32 %v1396, %v1476
          %v1493 = vsub.f32 %v1397, %v1477
          %v1494 = vsub.f32 %v1398, %v1478
          %v1495 = vlog2.pop %v1479
          %v1496 = vmul.f32 %v1495, 0.6931472
          %v1497 = vlog2.pop %v1480
          %v1498 = vmul.f32 %v1497, 0.6931472
          %v1499 = vlog2.pop %v1481
          %v1500 = vmul.f32 %v1499, 0.6931472
          %v1501 = vlog2.pop %v1482
          %v1502 = vmul.f32 %v1501, 0.6931472
          %v1503 = vlog2.pop %v1483
          %v1504 = vmul.f32 %v1503, 0.6931472
          %v1505 = vlog2.pop %v1484
          %v1506 = vmul.f32 %v1505, 0.6931472
          %v1507 = vlog2.pop %v1485
          %v1508 = vmul.f32 %v1507, 0.6931472
          %v1509 = vlog2.pop %v1486
          %v1510 = vmul.f32 %v1509, 0.6931472
          %v1511 = vlog2.pop %v1487
          %v1512 = vmul.f32 %v1511, 0.6931472
          %v1513 = vlog2.pop %v1488
          %v1514 = vmul.f32 %v1513, 0.6931472
          %v1515 = vlog2.pop %v1489
          %v1516 = vmul.f32 %v1515, 0.6931472
          %v1517 = vlog2.pop %v1490
          %v1518 = vmul.f32 %v1517, 0.6931472
          %v1519 = vlog2.pop %v1491
          %v1520 = vmul.f32 %v1519, 0.6931472
          %v1521 = vlog2.pop %v1492
          %v1522 = vmul.f32 %v1521, 0.6931472
          %v1523 = vlog2.pop %v1493
          %v1524 = vmul.f32 %v1523, 0.6931472
          %v1525 = vlog2.pop %v1494
          %v1526 = vmul.f32 %v1525, 0.6931472
          %v1527 = vadd.f32 %v1399, %v1496
          %v1528 = vadd.f32 %v1400, %v1498
          %v1529 = vadd.f32 %v1401, %v1500
          %v1530 = vadd.f32 %v1402, %v1502
          %v1531 = vadd.f32 %v1403, %v1504
          %v1532 = vadd.f32 %v1404, %v1506
          %v1533 = vadd.f32 %v1405, %v1508
          %v1534 = vadd.f32 %v1406, %v1510
          %v1535 = vadd.f32 %v1407, %v1512
          %v1536 = vadd.f32 %v1408, %v1514
          %v1537 = vadd.f32 %v1409, %v1516
          %v1538 = vadd.f32 %v1410, %v1518
          %v1539 = vadd.f32 %v1411, %v1520
          %v1540 = vadd.f32 %v1412, %v1522
          %v1541 = vadd.f32 %v1413, %v1524
          %v1542 = vadd.f32 %v1414, %v1526
          %v1543 = vld [vmem:[#allocation4] sm:$0xff]
          %v1544 = vld [vmem:[#allocation4 + $0x8] sm:$0xff]
          %v1545 = vld [vmem:[#allocation4 + $0x10] sm:$0xff]
          %v1546 = vld [vmem:[#allocation4 + $0x18] sm:$0xff]
          %v1547 = vld [vmem:[#allocation4 + $0x20] sm:$0xff]
          %v1548 = vld [vmem:[#allocation4 + $0x28] sm:$0xff]
          %v1549 = vld [vmem:[#allocation4 + $0x30] sm:$0xff]
          %v1550 = vld [vmem:[#allocation4 + $0x38] sm:$0xff]
          %v1551 = vld [vmem:[#allocation4 + $0x40] sm:$0xff]
          %v1552 = vld [vmem:[#allocation4 + $0x48] sm:$0xff]
          %v1553 = vld [vmem:[#allocation4 + $0x50] sm:$0xff]
          %v1554 = vld [vmem:[#allocation4 + $0x58] sm:$0xff]
          %v1555 = vld [vmem:[#allocation4 + $0x60] sm:$0xff]
          %v1556 = vld [vmem:[#allocation4 + $0x68] sm:$0xff]
          %v1557 = vld [vmem:[#allocation4 + $0x70] sm:$0xff]
          %v1558 = vld [vmem:[#allocation4 + $0x78] sm:$0xff]
          %v1559 = vsub.f32 %v1527, %v1543
          %v1560 = vsub.f32 %v1528, %v1544
          %v1561 = vsub.f32 %v1529, %v1545
          %v1562 = vsub.f32 %v1530, %v1546
          %v1563 = vsub.f32 %v1531, %v1547
          %v1564 = vsub.f32 %v1532, %v1548
          %v1565 = vsub.f32 %v1533, %v1549
          %v1566 = vsub.f32 %v1534, %v1550
          %v1567 = vsub.f32 %v1535, %v1551
          %v1568 = vsub.f32 %v1536, %v1552
          %v1569 = vsub.f32 %v1537, %v1553
          %v1570 = vsub.f32 %v1538, %v1554
          %v1571 = vsub.f32 %v1539, %v1555
          %v1572 = vsub.f32 %v1540, %v1556
          %v1573 = vsub.f32 %v1541, %v1557
          %v1574 = vsub.f32 %v1542, %v1558
          %v1575 = vld [vmem:[%s366] sm:$0xff]
          %v1576 = vld [vmem:[%s366 + $0x8] sm:$0xff]
          %v1577 = vld [vmem:[%s366 + $0x10] sm:$0xff]
          %v1578 = vld [vmem:[%s366 + $0x18] sm:$0xff]
          %v1579 = vld [vmem:[%s366 + $0x20] sm:$0xff]
          %v1580 = vld [vmem:[%s366 + $0x28] sm:$0xff]
          %v1581 = vld [vmem:[%s366 + $0x30] sm:$0xff]
          %v1582 = vld [vmem:[%s366 + $0x38] sm:$0xff]
          %v1583 = vld [vmem:[%s366 + $0x40] sm:$0xff]
          %v1584 = vld [vmem:[%s366 + $0x48] sm:$0xff]
          %v1585 = vld [vmem:[%s366 + $0x50] sm:$0xff]
          %v1586 = vld [vmem:[%s366 + $0x58] sm:$0xff]
          %v1587 = vld [vmem:[%s366 + $0x60] sm:$0xff]
          %v1588 = vld [vmem:[%s366 + $0x68] sm:$0xff]
          %v1589 = vld [vmem:[%s366 + $0x70] sm:$0xff]
          %v1590 = vld [vmem:[%s366 + $0x78] sm:$0xff]
          %v1591 = vmul.f32 %v1559, %v1575
          %v1592 = vmul.f32 %v1560, %v1576
          %v1593 = vmul.f32 %v1561, %v1577
          %v1594 = vmul.f32 %v1562, %v1578
          %v1595 = vmul.f32 %v1563, %v1579
          %v1596 = vmul.f32 %v1564, %v1580
          %v1597 = vmul.f32 %v1565, %v1581
          %v1598 = vmul.f32 %v1566, %v1582
          %v1599 = vmul.f32 %v1567, %v1583
          %v1600 = vmul.f32 %v1568, %v1584
          %v1601 = vmul.f32 %v1569, %v1585
          %v1602 = vmul.f32 %v1570, %v1586
          %v1603 = vmul.f32 %v1571, %v1587
          %v1604 = vmul.f32 %v1572, %v1588
          %v1605 = vmul.f32 %v1573, %v1589
          %v1606 = vmul.f32 %v1574, %v1590
          %1607 = vst.msk [vmem:[%s372] sm:$0xff] %vm1101, %v1591
          %1608 = vst.msk [vmem:[%s372 + $0x8] sm:$0xff] %vm1101, %v1592
          %1609 = vst.msk [vmem:[%s372 + $0x10] sm:$0xff] %vm1101, %v1593
          %1610 = vst.msk [vmem:[%s372 + $0x18] sm:$0xff] %vm1101, %v1594
          %1611 = vst.msk [vmem:[%s372 + $0x20] sm:$0xff] %vm1101, %v1595
          %1612 = vst.msk [vmem:[%s372 + $0x28] sm:$0xff] %vm1101, %v1596
          %1613 = vst.msk [vmem:[%s372 + $0x30] sm:$0xff] %vm1101, %v1597
          %1614 = vst.msk [vmem:[%s372 + $0x38] sm:$0xff] %vm1101, %v1598
          %1615 = vst.msk [vmem:[%s372 + $0x40] sm:$0xff] %vm1101, %v1599
          %1616 = vst.msk [vmem:[%s372 + $0x48] sm:$0xff] %vm1101, %v1600
          %1617 = vst.msk [vmem:[%s372 + $0x50] sm:$0xff] %vm1101, %v1601
          %1618 = vst.msk [vmem:[%s372 + $0x58] sm:$0xff] %vm1101, %v1602
          %1619 = vst.msk [vmem:[%s372 + $0x60] sm:$0xff] %vm1101, %v1603
          %1620 = vst.msk [vmem:[%s372 + $0x68] sm:$0xff] %vm1101, %v1604
          %1621 = vst.msk [vmem:[%s372 + $0x70] sm:$0xff] %vm1101, %v1605
          %1622 = vst.msk [vmem:[%s372 + $0x78] sm:$0xff] %vm1101, %v1606
        $region82: #{loss_wrapper_forward.1} parent=69 // pred_fallthru
          _
        %s1623 = smul.u32 16, %s19
        %p1624 = scmp.lt.s32.totalorder %s1623, 15
        %s1625 = scalar_select %p1624, %s1623, 15
        %s1626 = smul.addr %s1625, 8
        %s1627 = scalar_lea.vmem %s4, %s1626
        // Predicated region
        $region83: #{loss_wrapper_forward.1} parent=69 // pred_check
          %p1628 = pneg %p149
        $region84: #{loss_wrapper_forward.1} parent=69 // pred_check_branch
          %1630 = sbr.rel (%p1628) target = $region86
        $region85: #{loss_wrapper_forward.1} parent=69 // pred_region
          %s1631 = smul.u32 16, %s19
        $region86: #{loss_wrapper_forward.1} parent=69 // pred_fallthru
          _
        // Predicated region
        $region87: #{loss_wrapper_forward.1} parent=69 // pred_check
          %p1632 = pneg %p149
        $region88: #{loss_wrapper_forward.1} parent=69 // pred_check_branch
          %1634 = sbr.rel (%p1632) target = $region90
        $region89: #{loss_wrapper_forward.1} parent=69 // pred_region
          %s1635 = smul.u32 16, %s19
          %p1636 = scmp.lt.s32.totalorder %s1635, 15
          %s1637 = scalar_select %p1636, %s1635, 15
          %s1638 = smul.addr %s1637, 8
          %s1639 = scalar_lea.vmem %s4, %s1638
        $region90: #{loss_wrapper_forward.1} parent=69 // pred_fallthru
          _
      $region70: #{loss_wrapper_forward.1} parent=5 // pred_fallthru
        _
      %p1640 = scmp.le.s32.totalorder 2, %s10
      // Predicated region
      $region91: #{loss_wrapper_forward.1} parent=5 // pred_check
        %p1641 = pneg %p1640
      $region92: #{loss_wrapper_forward.1} parent=5 // pred_check_branch
        %1643 = sbr.rel (%p1641) target = $region94
      $region93: #{loss_wrapper_forward.1} parent=5 // pred_region
        %s1644 = ssub.s32 %s10, 2
      $region94: #{loss_wrapper_forward.1} parent=5 // pred_fallthru
        _
    $region6: #{loss_wrapper_forward.1} parent=1 // loop_footer
      %s14 = sadd.s32 1, %s10
    $region7: #{loss_wrapper_forward.1} parent=1 // loop_footer_branch
      %9 = sbr.rel target = $region3
    $region8: #{loss_wrapper_forward.1} parent=1 // loop_exit
      _

</llo_original>
